<compile_context>
chip_gen: v6e
topology: v6e:2x2x1
jax: 0.10.0
libtpu: 0.0.40
codegen_flags: <defaults>
</compile_context>

<pallas_src>
import numpy as np
import jax
import jax.numpy as jnp
from jax.experimental import pallas as pl
from jax.experimental.pallas import tpu as pltpu

PAD = 128  # lane-dense feature padding (one full vreg lane width)


def _round_up(v, m):
    return ((v + m - 1) // m) * m


def _vmem_spec():
    return pl.BlockSpec(memory_space=pltpu.MemorySpace.VMEM)


# ---------------------------------------------------------------------------
# Fused kernel: [PointNetConv -> max aggr -> global_nn -> BN -> ReLU] x L
#               -> global_max_pool -> Linear head
# ---------------------------------------------------------------------------
def fused_pointnet(x_b, idx_col, rel, w1p_pad, p, segs, naug):
    """x_b: [N,128] bf16 node features; idx_col: [K*N,1] int32 slot-major neighbor ids;
    rel: [K*N,2] f32 (pos_j - pos_i); w1p_pad: [L, naug-N, 128] bf16; segs: static
    per-graph (start, count) row slices for the pool."""
    N, C = x_b.shape
    NK = idx_col.shape[0]
    K = NK // N                      # k neighbors + 1 self loop
    L = int(p["w1x"].shape[0])
    FIN = int(p["w1x"].shape[1])     # trimmed weight contraction width (multiple of 16)
    B = len(segs)

    def kernel(x_ref, idx_ref, rel_ref, w1x_ref, w1p_ref, b1_ref, w2_ref, b2_ref,
               gamma_ref, beta_ref, wlin_ref, blin_ref, out_ref):
        # ---- augmented gather matrix, built once in f32 VPU ops, reused by all layers
        #      columns 0..N-1 : one-hot of the (slot-major) source node index
        #      column  N      : rel_x,   column N+1 : rel_y,   N+2..naug-1 : zero pad
        col = jax.lax.broadcasted_iota(jnp.int32, (NK, naug), 1)
        oneh = (col == idx_ref[...]).astype(jnp.float32)              # [NK, naug]
        gaug = jnp.where(col == N, rel_ref[:, 0:1], oneh)
        gaug = jnp.where(col == N + 1, rel_ref[:, 1:2], gaug)
        gaug = gaug.astype(jnp.bfloat16)                              # MXU operand

        x = x_ref[...]                                                # [N, C] bf16
        for l in range(L):                                            # static unroll
            # local_nn feature term: the Linear commutes with the gather, so do the
            # node-level matmul first (N rows, not K*N), then gather its result.
            hx = jnp.dot(x[:, :FIN].astype(jnp.bfloat16), w1x_ref[l],
                         preferred_element_type=jnp.float32)          # [N, C] f32
            # position term folded into the gather matmul: stack w1p rows under hx.
            haug = jnp.concatenate([hx.astype(jnp.bfloat16), w1p_ref[l]], axis=0)
            msg = jnp.dot(gaug, haug, preferred_element_type=jnp.float32)  # [NK, C]
            h = jnp.maximum(msg + b1_ref[l], 0.0)                     # local_nn ReLU
            # 'max' aggregation over the K slots (slot-major rows -> aligned [N,C]
            # slices); balanced tree keeps the VALU dependency chain at ceil(log2 K).
            parts = [h[s * N:(s + 1) * N, :] for s in range(K)]
            while len(parts) > 1:
                nxt = [jnp.maximum(parts[i], parts[i + 1])
                       for i in range(0, len(parts) - 1, 2)]
                if len(parts) % 2:
                    nxt.append(parts[-1])
                parts = nxt
            agg = parts[0]                                            # [N, C]
            # global_nn: Linear + ReLU
            g = jnp.dot(agg[:, :FIN].astype(jnp.bfloat16), w2_ref[l],
                        preferred_element_type=jnp.float32) + b2_ref[l]
            g = jnp.maximum(g, 0.0)
            # BatchNorm (training-mode batch stats, biased var, eps=1e-5), one pass.
            mean = jnp.mean(g, axis=0, keepdims=True)
            var = jnp.mean(g * g, axis=0, keepdims=True) - mean * mean
            y = (g - mean) * jax.lax.rsqrt(var + 1e-5) * gamma_ref[l] + beta_ref[l]
            x = jnp.maximum(y, 0.0)                                   # outer ReLU, f32

        # global_max_pool: static contiguous per-graph row slices (no mask, exact
        # regardless of sign).
        pooled = jnp.concatenate(
            [jnp.max(x[s:s + c, :], axis=0, keepdims=True) for (s, c) in segs],
            axis=0)                                                   # [B, C]
        # final Linear head (n_lin = 1)
        out_ref[...] = (jnp.dot(pooled[:, :FIN].astype(jnp.bfloat16), wlin_ref[...],
                                preferred_element_type=jnp.float32) + blin_ref[...])

    flops = int(L * (4 * N * FIN * C + 2 * NK * naug * C) + 2 * B * FIN * C)
    bytes_accessed = int(sum(int(a.size) * a.dtype.itemsize for a in
                             (x_b, idx_col, rel, w1p_pad, p["w1x"], p["b1"], p["w2"],
                              p["b2"], p["gamma"], p["beta"], p["wlin"], p["blin"]))
                         + 4 * B * C)
    return pl.pallas_call(
        kernel,
        out_shape=jax.ShapeDtypeStruct((B, C), jnp.float32),
        in_specs=[_vmem_spec()] * 12,
        out_specs=_vmem_spec(),
        cost_estimate=pl.CostEstimate(flops=flops, transcendentals=int(L * C),
                                      bytes_accessed=bytes_accessed),
    )(x_b, idx_col, rel, p["w1x"], w1p_pad, p["b1"], p["w2"], p["b2"],
      p["gamma"], p["beta"], p["wlin"], p["blin"])


# ---------------------------------------------------------------------------
# Plain-JAX glue: kNN graph construction (knn_graph, loop=False).
# Pairwise distances + top_k stay in XLA; everything dense (matmuls, gather,
# aggregation, BN, activations, pooling, head) runs in the Pallas kernel.
# Note: with integer coordinates, top_k tie-breaking may differ from PyG knn_graph.
# ---------------------------------------------------------------------------
def knn_indices(pos, batch, k):
    N = pos.shape[0]
    d2 = jnp.sum((pos[:, None, :] - pos[None, :, :]) ** 2, axis=-1)      # [N, N]
    valid = (batch[:, None] == batch[None, :]) & ~jnp.eye(N, dtype=bool)
    d2 = jnp.where(valid, d2, jnp.inf)
    _, idx = jax.lax.top_k(-d2, k)                                       # k nearest same-batch
    return idx                                                           # [N, k]


# ---------------------------------------------------------------------------
# Parameter init (deterministic, PyTorch-Linear-style uniform).
# MXU-facing weights: bf16, contraction dim trimmed to FIN (multiple of 16) and
# output dim zero-padded to 128 lanes.  Biases / BN params stay f32.
# ---------------------------------------------------------------------------
def _linear_init(key, fan_in, fan_out):
    kw, kb = jax.random.split(key)
    bound = 1.0 / float(fan_in) ** 0.5
    w = jax.random.uniform(kw, (fan_in, fan_out), minval=-bound, maxval=bound,
                           dtype=jnp.float32)
    b = jax.random.uniform(kb, (1, fan_out), minval=-bound, maxval=bound,
                           dtype=jnp.float32)
    return w, b


def _pad2(a, rows, cols, dtype=None):
    out = jnp.pad(a, ((0, rows - a.shape[0]), (0, cols - a.shape[1])))
    return out if dtype is None else out.astype(dtype)


def init_params(key, planes, graph_out, n_out, ndim=2, pad=PAD):
    n_layers = len(planes) - 1
    fin = _round_up(max(planes), 16)          # shared trimmed contraction width
    keys = jax.random.split(key, n_layers + 1)
    w1x, w1p, b1, w2, b2, gamma, beta = [], [], [], [], [], [], []
    for i in range(n_layers):
        nin, nout = planes[i], planes[i + 1]
        kl, kg = jax.random.split(keys[i])
        w1, bb1 = _linear_init(kl, nin + ndim, nout)       # local_nn  Linear(F+2 -> Fout)
        w2_, bb2 = _linear_init(kg, nout, nout)            # global_nn Linear(Fout -> Fout)
        w1x.append(_pad2(w1[:nin], fin, pad, jnp.bfloat16))   # feature part of local_nn
        w1p.append(_pad2(w1[nin:], ndim, pad, jnp.bfloat16))  # position part of local_nn
        b1.append(_pad2(bb1, 1, pad))
        w2.append(_pad2(w2_, fin, pad, jnp.bfloat16))
        b2.append(_pad2(bb2, 1, pad))
        gamma.append(_pad2(jnp.ones((1, nout), jnp.float32), 1, pad))
        beta.append(_pad2(jnp.zeros((1, nout), jnp.float32), 1, pad))
    # n_lin = 1 head: single Linear(graph_out -> n_out)
    # TODO(synk): LinearBlock internals for n_lin > 1 (intermediate widths / activations) unknown.
    wl, bl = _linear_init(keys[-1], graph_out, n_out)
    return dict(
        w1x=jnp.stack(w1x), w1p=jnp.stack(w1p), b1=jnp.stack(b1),
        w2=jnp.stack(w2), b2=jnp.stack(b2),
        gamma=jnp.stack(gamma), beta=jnp.stack(beta),
        wlin=_pad2(wl, fin, pad, jnp.bfloat16), blin=_pad2(bl, 1, pad),
        n_out=n_out)


# ---------------------------------------------------------------------------
# Full forward
# ---------------------------------------------------------------------------
def pointnet_forward(coo, x, params, k, n_graphs):
    pos = coo[:, 0:2].astype(jnp.float32)
    batch = coo[:, 2]
    N, F = x.shape
    K = k + 1
    nbr = knn_indices(pos, batch, k)                                   # [N, k]
    # PointNetConv(add_self_loops=True): append a self edge per node (last slot).
    idx = jnp.concatenate([nbr, jnp.arange(N)[:, None]], axis=1)       # [N, K]
    # slot-major flattening (row = slot*N + node) keeps the in-kernel max
    # aggregation on aligned [N, C] slices.
    idx_sm = idx.T.reshape(-1)                                         # [K*N]
    idx_col = idx_sm[:, None].astype(jnp.int32)                        # [K*N, 1]
    rel = (pos[idx] - pos[:, None, :]).transpose(1, 0, 2).reshape(K * N, 2)  # pos_j - pos_i
    # lane-dense features, bf16 (MXU operand only).
    x_b = jnp.pad(x.astype(jnp.float32), ((0, 0), (0, PAD - F))).astype(jnp.bfloat16)

    # Static per-graph row segments for the contiguous-slice global_max_pool.
    b_np = np.asarray(jax.device_get(batch))
    assert np.all(np.diff(b_np) >= 0), "batch ids must be sorted/contiguous for static-slice pooling"
    counts = np.bincount(b_np, minlength=n_graphs)
    assert counts.min() > k, "each graph needs > k nodes for a valid kNN graph"
    starts = np.concatenate([[0], np.cumsum(counts)[:-1]])
    segs = tuple((int(s), int(c)) for s, c in zip(starts, counts))

    # Pad w1p rows so the augmented contraction dim (N + rows) is a multiple of 16.
    naug = _round_up(N + 2, 16)
    w1p = params["w1p"]
    w1p_pad = jnp.pad(w1p, ((0, 0), (0, (naug - N) - w1p.shape[1]), (0, 0)))

    out = fused_pointnet(x_b, idx_col, rel, w1p_pad, params, segs, naug)   # [B, 128]
    return out[:, :params["n_out"]]


if __name__ == "__main__":
    # Small config: n_samples=8 -> feat_size=16, n_graph=2, graph_out=8,
    # linear reduction -> planes [16, 12, 8]; k=6; n_lin=1 with n_type=3 outputs.
    N_PER_GRAPH = 16
    N_GRAPHS = 2
    N = N_PER_GRAPH * N_GRAPHS
    K_NN = 6
    N_SAMPLES = 8
    FEAT = N_SAMPLES * 2
    GRAPH_OUT = 8
    N_GRAPH_LAYERS = 2
    N_OUT = 3

    planes = [FEAT]
    red = int((FEAT - GRAPH_OUT) / N_GRAPH_LAYERS)
    for _ in range(N_GRAPH_LAYERS):
        planes.append(planes[-1] - red)
    planes[-1] = GRAPH_OUT                                             # [16, 12, 8]

    key = jax.random.PRNGKey(0)
    k0, k1, k2 = jax.random.split(key, 3)
    # coo = data[0].long(): integer coords [x, y, batch_id]
    xy = jax.random.randint(k0, (N, 2), 0, 20)
    batch = jnp.repeat(jnp.arange(N_GRAPHS), N_PER_GRAPH)
    coo = jnp.concatenate([xy, batch[:, None]], axis=1).astype(jnp.int32)
    # data[1]: node features
    x = jax.random.normal(k1, (N, FEAT), dtype=jnp.float32)

    params = init_params(k2, planes, GRAPH_OUT, N_OUT)

    out = pointnet_forward(coo, x, params, K_NN, N_GRAPHS)
    out = jax.block_until_ready(out)
    assert out.shape == (N_GRAPHS, N_OUT)
    print("KERNEL_OK")
</pallas_src>

<mosaic_0001>
module attributes {stable_mosaic.version = 11 : i64} {
  func.func @kernel(%arg0: memref<32x128xbf16, #tpu.memory_space<vmem>>, %arg1: memref<224x1xi32, #tpu.memory_space<vmem>>, %arg2: memref<224x2xf32, #tpu.memory_space<vmem>>, %arg3: memref<2x16x128xbf16, #tpu.memory_space<vmem>>, %arg4: memref<2x16x128xbf16, #tpu.memory_space<vmem>>, %arg5: memref<2x1x128xf32, #tpu.memory_space<vmem>>, %arg6: memref<2x16x128xbf16, #tpu.memory_space<vmem>>, %arg7: memref<2x1x128xf32, #tpu.memory_space<vmem>>, %arg8: memref<2x1x128xf32, #tpu.memory_space<vmem>>, %arg9: memref<2x1x128xf32, #tpu.memory_space<vmem>>, %arg10: memref<16x128xbf16, #tpu.memory_space<vmem>>, %arg11: memref<1x128xf32, #tpu.memory_space<vmem>>, %arg12: memref<2x128xf32, #tpu.memory_space<vmem>>) attributes {dimension_semantics = [], scalar_prefetch = 0 : i64, scratch_operands = 0 : i64, tpu.core_type = #tpu.core_type<tc>} {
    %0 = tpu.iota {dimensions = array<i32: 1>} : vector<224x48xi32>
    %c0 = arith.constant 0 : index
    %c0_0 = arith.constant 0 : index
    %1 = vector.load %arg1[%c0, %c0_0] : memref<224x1xi32, #tpu.memory_space<vmem>>, vector<224x1xi32>
    %2 = vector.broadcast %1 : vector<224x1xi32> to vector<224x48xi32>
    %3 = arith.cmpi eq, %0, %2 : vector<224x48xi32>
    %4 = arith.extui %3 : vector<224x48xi1> to vector<224x48xi32>
    %5 = arith.sitofp %4 : vector<224x48xi32> to vector<224x48xf32>
    %c32_i32 = arith.constant 32 : i32
    %6 = vector.broadcast %c32_i32 : i32 to vector<224x48xi32>
    %7 = arith.cmpi eq, %0, %6 : vector<224x48xi32>
    %c0_1 = arith.constant 0 : index
    %c0_2 = arith.constant 0 : index
    %8 = vector.load %arg2[%c0_1, %c0_2] : memref<224x2xf32, #tpu.memory_space<vmem>>, vector<224x1xf32>
    %9 = vector.shape_cast %8 : vector<224x1xf32> to vector<224x1xf32>
    %10 = vector.broadcast %9 : vector<224x1xf32> to vector<224x48xf32>
    %11 = arith.select %7, %10, %5 : vector<224x48xi1>, vector<224x48xf32>
    %c33_i32 = arith.constant 33 : i32
    %12 = vector.broadcast %c33_i32 : i32 to vector<224x48xi32>
    %13 = arith.cmpi eq, %0, %12 : vector<224x48xi32>
    %c0_3 = arith.constant 0 : index
    %c1 = arith.constant 1 : index
    %14 = vector.load %arg2[%c0_3, %c1] : memref<224x2xf32, #tpu.memory_space<vmem>>, vector<224x1xf32>
    %15 = vector.shape_cast %14 : vector<224x1xf32> to vector<224x1xf32>
    %16 = vector.broadcast %15 : vector<224x1xf32> to vector<224x48xf32>
    %17 = arith.select %13, %16, %11 : vector<224x48xi1>, vector<224x48xf32>
    %18 = arith.truncf %17 : vector<224x48xf32> to vector<224x48xbf16>
    %c0_4 = arith.constant 0 : index
    %c0_5 = arith.constant 0 : index
    %19 = vector.load %arg0[%c0_4, %c0_5] : memref<32x128xbf16, #tpu.memory_space<vmem>>, vector<32x128xbf16>
    %20 = vector.extract_strided_slice %19 {offsets = [0, 0], sizes = [32, 16], strides = [1, 1]} : vector<32x128xbf16> to vector<32x16xbf16>
    %c0_6 = arith.constant 0 : index
    %c0_7 = arith.constant 0 : index
    %c0_8 = arith.constant 0 : index
    %21 = vector.load %arg3[%c0_6, %c0_7, %c0_8] : memref<2x16x128xbf16, #tpu.memory_space<vmem>>, vector<1x16x128xbf16>
    %22 = vector.shape_cast %21 : vector<1x16x128xbf16> to vector<16x128xbf16>
    %cst = arith.constant dense<0.000000e+00> : vector<32x128xf32>
    %23 = tpu.matmul %20, %22, %cst {dimension_numbers = #tpu.dot_dimension_numbers<[1], [0], [0], [1], [0, 0, 1, 1], [], []>} : vector<32x16xbf16>, vector<16x128xbf16>, vector<32x128xf32> -> vector<32x128xf32>
    %24 = arith.truncf %23 : vector<32x128xf32> to vector<32x128xbf16>
    %c0_9 = arith.constant 0 : index
    %c0_10 = arith.constant 0 : index
    %c0_11 = arith.constant 0 : index
    %25 = vector.load %arg4[%c0_9, %c0_10, %c0_11] : memref<2x16x128xbf16, #tpu.memory_space<vmem>>, vector<1x16x128xbf16>
    %26 = vector.shape_cast %25 : vector<1x16x128xbf16> to vector<16x128xbf16>
    %27 = tpu.concatenate %24, %26 in 0 : vector<32x128xbf16>, vector<16x128xbf16> -> vector<48x128xbf16>
    %cst_12 = arith.constant dense<0.000000e+00> : vector<224x128xf32>
    %28 = tpu.matmul %18, %27, %cst_12 {dimension_numbers = #tpu.dot_dimension_numbers<[1], [0], [0], [1], [0, 0, 1, 1], [], []>} : vector<224x48xbf16>, vector<48x128xbf16>, vector<224x128xf32> -> vector<224x128xf32>
    %c0_13 = arith.constant 0 : index
    %c0_14 = arith.constant 0 : index
    %c0_15 = arith.constant 0 : index
    %29 = vector.load %arg5[%c0_13, %c0_14, %c0_15] : memref<2x1x128xf32, #tpu.memory_space<vmem>>, vector<1x1x128xf32>
    %30 = vector.shape_cast %29 : vector<1x1x128xf32> to vector<1x128xf32>
    %31 = vector.broadcast %30 : vector<1x128xf32> to vector<224x128xf32>
    %32 = arith.addf %28, %31 : vector<224x128xf32>
    %cst_16 = arith.constant 0.000000e+00 : f32
    %33 = vector.broadcast %cst_16 : f32 to vector<224x128xf32>
    %34 = arith.maximumf %32, %33 : vector<224x128xf32>
    %35 = vector.extract_strided_slice %34 {offsets = [0, 0], sizes = [32, 128], strides = [1, 1]} : vector<224x128xf32> to vector<32x128xf32>
    %36 = vector.extract_strided_slice %34 {offsets = [32, 0], sizes = [32, 128], strides = [1, 1]} : vector<224x128xf32> to vector<32x128xf32>
    %37 = vector.extract_strided_slice %34 {offsets = [64, 0], sizes = [32, 128], strides = [1, 1]} : vector<224x128xf32> to vector<32x128xf32>
    %38 = vector.extract_strided_slice %34 {offsets = [96, 0], sizes = [32, 128], strides = [1, 1]} : vector<224x128xf32> to vector<32x128xf32>
    %39 = vector.extract_strided_slice %34 {offsets = [128, 0], sizes = [32, 128], strides = [1, 1]} : vector<224x128xf32> to vector<32x128xf32>
    %40 = vector.extract_strided_slice %34 {offsets = [160, 0], sizes = [32, 128], strides = [1, 1]} : vector<224x128xf32> to vector<32x128xf32>
    %41 = vector.extract_strided_slice %34 {offsets = [192, 0], sizes = [32, 128], strides = [1, 1]} : vector<224x128xf32> to vector<32x128xf32>
    %42 = arith.maximumf %35, %36 : vector<32x128xf32>
    %43 = arith.maximumf %37, %38 : vector<32x128xf32>
    %44 = arith.maximumf %39, %40 : vector<32x128xf32>
    %45 = arith.maximumf %42, %43 : vector<32x128xf32>
    %46 = arith.maximumf %44, %41 : vector<32x128xf32>
    %47 = arith.maximumf %45, %46 : vector<32x128xf32>
    %48 = vector.extract_strided_slice %47 {offsets = [0, 0], sizes = [32, 16], strides = [1, 1]} : vector<32x128xf32> to vector<32x16xf32>
    %49 = arith.truncf %48 : vector<32x16xf32> to vector<32x16xbf16>
    %c0_17 = arith.constant 0 : index
    %c0_18 = arith.constant 0 : index
    %c0_19 = arith.constant 0 : index
    %50 = vector.load %arg6[%c0_17, %c0_18, %c0_19] : memref<2x16x128xbf16, #tpu.memory_space<vmem>>, vector<1x16x128xbf16>
    %51 = vector.shape_cast %50 : vector<1x16x128xbf16> to vector<16x128xbf16>
    %cst_20 = arith.constant dense<0.000000e+00> : vector<32x128xf32>
    %52 = tpu.matmul %49, %51, %cst_20 {dimension_numbers = #tpu.dot_dimension_numbers<[1], [0], [0], [1], [0, 0, 1, 1], [], []>} : vector<32x16xbf16>, vector<16x128xbf16>, vector<32x128xf32> -> vector<32x128xf32>
    %c0_21 = arith.constant 0 : index
    %c0_22 = arith.constant 0 : index
    %c0_23 = arith.constant 0 : index
    %53 = vector.load %arg7[%c0_21, %c0_22, %c0_23] : memref<2x1x128xf32, #tpu.memory_space<vmem>>, vector<1x1x128xf32>
    %54 = vector.shape_cast %53 : vector<1x1x128xf32> to vector<1x128xf32>
    %55 = vector.broadcast %54 : vector<1x128xf32> to vector<32x128xf32>
    %56 = arith.addf %52, %55 : vector<32x128xf32>
    %cst_24 = arith.constant 0.000000e+00 : f32
    %57 = vector.broadcast %cst_24 : f32 to vector<32x128xf32>
    %58 = arith.maximumf %56, %57 : vector<32x128xf32>
    %cst_25 = arith.constant dense<0.000000e+00> : vector<128xf32>
    %59 = vector.multi_reduction <add>, %58, %cst_25 [0] : vector<32x128xf32> to vector<128xf32>
    %60 = vector.shape_cast %59 : vector<128xf32> to vector<1x128xf32>
    %cst_26 = arith.constant 3.200000e+01 : f32
    %61 = vector.broadcast %cst_26 : f32 to vector<1x128xf32>
    %62 = arith.divf %60, %61 : vector<1x128xf32>
    %63 = arith.mulf %58, %58 : vector<32x128xf32>
    %cst_27 = arith.constant dense<0.000000e+00> : vector<128xf32>
    %64 = vector.multi_reduction <add>, %63, %cst_27 [0] : vector<32x128xf32> to vector<128xf32>
    %65 = vector.shape_cast %64 : vector<128xf32> to vector<1x128xf32>
    %cst_28 = arith.constant 3.200000e+01 : f32
    %66 = vector.broadcast %cst_28 : f32 to vector<1x128xf32>
    %67 = arith.divf %65, %66 : vector<1x128xf32>
    %68 = arith.mulf %62, %62 : vector<1x128xf32>
    %69 = arith.subf %67, %68 : vector<1x128xf32>
    %70 = vector.broadcast %62 : vector<1x128xf32> to vector<32x128xf32>
    %71 = arith.subf %58, %70 : vector<32x128xf32>
    %cst_29 = arith.constant 9.99999974E-6 : f32
    %72 = vector.broadcast %cst_29 : f32 to vector<1x128xf32>
    %73 = arith.addf %69, %72 : vector<1x128xf32>
    %74 = math.rsqrt %73 : vector<1x128xf32>
    %75 = vector.broadcast %74 : vector<1x128xf32> to vector<32x128xf32>
    %76 = arith.mulf %71, %75 : vector<32x128xf32>
    %c0_30 = arith.constant 0 : index
    %c0_31 = arith.constant 0 : index
    %c0_32 = arith.constant 0 : index
    %77 = vector.load %arg8[%c0_30, %c0_31, %c0_32] : memref<2x1x128xf32, #tpu.memory_space<vmem>>, vector<1x1x128xf32>
    %78 = vector.shape_cast %77 : vector<1x1x128xf32> to vector<1x128xf32>
    %79 = vector.broadcast %78 : vector<1x128xf32> to vector<32x128xf32>
    %80 = arith.mulf %76, %79 : vector<32x128xf32>
    %c0_33 = arith.constant 0 : index
    %c0_34 = arith.constant 0 : index
    %c0_35 = arith.constant 0 : index
    %81 = vector.load %arg9[%c0_33, %c0_34, %c0_35] : memref<2x1x128xf32, #tpu.memory_space<vmem>>, vector<1x1x128xf32>
    %82 = vector.shape_cast %81 : vector<1x1x128xf32> to vector<1x128xf32>
    %83 = vector.broadcast %82 : vector<1x128xf32> to vector<32x128xf32>
    %84 = arith.addf %80, %83 : vector<32x128xf32>
    %cst_36 = arith.constant 0.000000e+00 : f32
    %85 = vector.broadcast %cst_36 : f32 to vector<32x128xf32>
    %86 = arith.maximumf %84, %85 : vector<32x128xf32>
    %87 = vector.extract_strided_slice %86 {offsets = [0, 0], sizes = [32, 16], strides = [1, 1]} : vector<32x128xf32> to vector<32x16xf32>
    %88 = arith.truncf %87 : vector<32x16xf32> to vector<32x16xbf16>
    %c1_37 = arith.constant 1 : index
    %c0_38 = arith.constant 0 : index
    %c0_39 = arith.constant 0 : index
    %89 = vector.load %arg3[%c1_37, %c0_38, %c0_39] : memref<2x16x128xbf16, #tpu.memory_space<vmem>>, vector<1x16x128xbf16>
    %90 = vector.shape_cast %89 : vector<1x16x128xbf16> to vector<16x128xbf16>
    %cst_40 = arith.constant dense<0.000000e+00> : vector<32x128xf32>
    %91 = tpu.matmul %88, %90, %cst_40 {dimension_numbers = #tpu.dot_dimension_numbers<[1], [0], [0], [1], [0, 0, 1, 1], [], []>} : vector<32x16xbf16>, vector<16x128xbf16>, vector<32x128xf32> -> vector<32x128xf32>
    %92 = arith.truncf %91 : vector<32x128xf32> to vector<32x128xbf16>
    %c1_41 = arith.constant 1 : index
    %c0_42 = arith.constant 0 : index
    %c0_43 = arith.constant 0 : index
    %93 = vector.load %arg4[%c1_41, %c0_42, %c0_43] : memref<2x16x128xbf16, #tpu.memory_space<vmem>>, vector<1x16x128xbf16>
    %94 = vector.shape_cast %93 : vector<1x16x128xbf16> to vector<16x128xbf16>
    %95 = tpu.concatenate %92, %94 in 0 : vector<32x128xbf16>, vector<16x128xbf16> -> vector<48x128xbf16>
    %cst_44 = arith.constant dense<0.000000e+00> : vector<224x128xf32>
    %96 = tpu.matmul %18, %95, %cst_44 {dimension_numbers = #tpu.dot_dimension_numbers<[1], [0], [0], [1], [0, 0, 1, 1], [], []>} : vector<224x48xbf16>, vector<48x128xbf16>, vector<224x128xf32> -> vector<224x128xf32>
    %c1_45 = arith.constant 1 : index
    %c0_46 = arith.constant 0 : index
    %c0_47 = arith.constant 0 : index
    %97 = vector.load %arg5[%c1_45, %c0_46, %c0_47] : memref<2x1x128xf32, #tpu.memory_space<vmem>>, vector<1x1x128xf32>
    %98 = vector.shape_cast %97 : vector<1x1x128xf32> to vector<1x128xf32>
    %99 = vector.broadcast %98 : vector<1x128xf32> to vector<224x128xf32>
    %100 = arith.addf %96, %99 : vector<224x128xf32>
    %cst_48 = arith.constant 0.000000e+00 : f32
    %101 = vector.broadcast %cst_48 : f32 to vector<224x128xf32>
    %102 = arith.maximumf %100, %101 : vector<224x128xf32>
    %103 = vector.extract_strided_slice %102 {offsets = [0, 0], sizes = [32, 128], strides = [1, 1]} : vector<224x128xf32> to vector<32x128xf32>
    %104 = vector.extract_strided_slice %102 {offsets = [32, 0], sizes = [32, 128], strides = [1, 1]} : vector<224x128xf32> to vector<32x128xf32>
    %105 = vector.extract_strided_slice %102 {offsets = [64, 0], sizes = [32, 128], strides = [1, 1]} : vector<224x128xf32> to vector<32x128xf32>
    %106 = vector.extract_strided_slice %102 {offsets = [96, 0], sizes = [32, 128], strides = [1, 1]} : vector<224x128xf32> to vector<32x128xf32>
    %107 = vector.extract_strided_slice %102 {offsets = [128, 0], sizes = [32, 128], strides = [1, 1]} : vector<224x128xf32> to vector<32x128xf32>
    %108 = vector.extract_strided_slice %102 {offsets = [160, 0], sizes = [32, 128], strides = [1, 1]} : vector<224x128xf32> to vector<32x128xf32>
    %109 = vector.extract_strided_slice %102 {offsets = [192, 0], sizes = [32, 128], strides = [1, 1]} : vector<224x128xf32> to vector<32x128xf32>
    %110 = arith.maximumf %103, %104 : vector<32x128xf32>
    %111 = arith.maximumf %105, %106 : vector<32x128xf32>
    %112 = arith.maximumf %107, %108 : vector<32x128xf32>
    %113 = arith.maximumf %110, %111 : vector<32x128xf32>
    %114 = arith.maximumf %112, %109 : vector<32x128xf32>
    %115 = arith.maximumf %113, %114 : vector<32x128xf32>
    %116 = vector.extract_strided_slice %115 {offsets = [0, 0], sizes = [32, 16], strides = [1, 1]} : vector<32x128xf32> to vector<32x16xf32>
    %117 = arith.truncf %116 : vector<32x16xf32> to vector<32x16xbf16>
    %c1_49 = arith.constant 1 : index
    %c0_50 = arith.constant 0 : index
    %c0_51 = arith.constant 0 : index
    %118 = vector.load %arg6[%c1_49, %c0_50, %c0_51] : memref<2x16x128xbf16, #tpu.memory_space<vmem>>, vector<1x16x128xbf16>
    %119 = vector.shape_cast %118 : vector<1x16x128xbf16> to vector<16x128xbf16>
    %cst_52 = arith.constant dense<0.000000e+00> : vector<32x128xf32>
    %120 = tpu.matmul %117, %119, %cst_52 {dimension_numbers = #tpu.dot_dimension_numbers<[1], [0], [0], [1], [0, 0, 1, 1], [], []>} : vector<32x16xbf16>, vector<16x128xbf16>, vector<32x128xf32> -> vector<32x128xf32>
    %c1_53 = arith.constant 1 : index
    %c0_54 = arith.constant 0 : index
    %c0_55 = arith.constant 0 : index
    %121 = vector.load %arg7[%c1_53, %c0_54, %c0_55] : memref<2x1x128xf32, #tpu.memory_space<vmem>>, vector<1x1x128xf32>
    %122 = vector.shape_cast %121 : vector<1x1x128xf32> to vector<1x128xf32>
    %123 = vector.broadcast %122 : vector<1x128xf32> to vector<32x128xf32>
    %124 = arith.addf %120, %123 : vector<32x128xf32>
    %cst_56 = arith.constant 0.000000e+00 : f32
    %125 = vector.broadcast %cst_56 : f32 to vector<32x128xf32>
    %126 = arith.maximumf %124, %125 : vector<32x128xf32>
    %cst_57 = arith.constant dense<0.000000e+00> : vector<128xf32>
    %127 = vector.multi_reduction <add>, %126, %cst_57 [0] : vector<32x128xf32> to vector<128xf32>
    %128 = vector.shape_cast %127 : vector<128xf32> to vector<1x128xf32>
    %cst_58 = arith.constant 3.200000e+01 : f32
    %129 = vector.broadcast %cst_58 : f32 to vector<1x128xf32>
    %130 = arith.divf %128, %129 : vector<1x128xf32>
    %131 = arith.mulf %126, %126 : vector<32x128xf32>
    %cst_59 = arith.constant dense<0.000000e+00> : vector<128xf32>
    %132 = vector.multi_reduction <add>, %131, %cst_59 [0] : vector<32x128xf32> to vector<128xf32>
    %133 = vector.shape_cast %132 : vector<128xf32> to vector<1x128xf32>
    %cst_60 = arith.constant 3.200000e+01 : f32
    %134 = vector.broadcast %cst_60 : f32 to vector<1x128xf32>
    %135 = arith.divf %133, %134 : vector<1x128xf32>
    %136 = arith.mulf %130, %130 : vector<1x128xf32>
    %137 = arith.subf %135, %136 : vector<1x128xf32>
    %138 = vector.broadcast %130 : vector<1x128xf32> to vector<32x128xf32>
    %139 = arith.subf %126, %138 : vector<32x128xf32>
    %cst_61 = arith.constant 9.99999974E-6 : f32
    %140 = vector.broadcast %cst_61 : f32 to vector<1x128xf32>
    %141 = arith.addf %137, %140 : vector<1x128xf32>
    %142 = math.rsqrt %141 : vector<1x128xf32>
    %143 = vector.broadcast %142 : vector<1x128xf32> to vector<32x128xf32>
    %144 = arith.mulf %139, %143 : vector<32x128xf32>
    %c1_62 = arith.constant 1 : index
    %c0_63 = arith.constant 0 : index
    %c0_64 = arith.constant 0 : index
    %145 = vector.load %arg8[%c1_62, %c0_63, %c0_64] : memref<2x1x128xf32, #tpu.memory_space<vmem>>, vector<1x1x128xf32>
    %146 = vector.shape_cast %145 : vector<1x1x128xf32> to vector<1x128xf32>
    %147 = vector.broadcast %146 : vector<1x128xf32> to vector<32x128xf32>
    %148 = arith.mulf %144, %147 : vector<32x128xf32>
    %c1_65 = arith.constant 1 : index
    %c0_66 = arith.constant 0 : index
    %c0_67 = arith.constant 0 : index
    %149 = vector.load %arg9[%c1_65, %c0_66, %c0_67] : memref<2x1x128xf32, #tpu.memory_space<vmem>>, vector<1x1x128xf32>
    %150 = vector.shape_cast %149 : vector<1x1x128xf32> to vector<1x128xf32>
    %151 = vector.broadcast %150 : vector<1x128xf32> to vector<32x128xf32>
    %152 = arith.addf %148, %151 : vector<32x128xf32>
    %cst_68 = arith.constant 0.000000e+00 : f32
    %153 = vector.broadcast %cst_68 : f32 to vector<32x128xf32>
    %154 = arith.maximumf %152, %153 : vector<32x128xf32>
    %155 = vector.extract_strided_slice %154 {offsets = [0, 0], sizes = [16, 128], strides = [1, 1]} : vector<32x128xf32> to vector<16x128xf32>
    %cst_69 = arith.constant dense<0xFF800000> : vector<128xf32>
    %156 = vector.multi_reduction <maximumf>, %155, %cst_69 [0] : vector<16x128xf32> to vector<128xf32>
    %157 = vector.shape_cast %156 : vector<128xf32> to vector<1x128xf32>
    %158 = vector.extract_strided_slice %154 {offsets = [16, 0], sizes = [16, 128], strides = [1, 1]} : vector<32x128xf32> to vector<16x128xf32>
    %cst_70 = arith.constant dense<0xFF800000> : vector<128xf32>
    %159 = vector.multi_reduction <maximumf>, %158, %cst_70 [0] : vector<16x128xf32> to vector<128xf32>
    %160 = vector.shape_cast %159 : vector<128xf32> to vector<1x128xf32>
    %161 = tpu.concatenate %157, %160 in 0 : vector<1x128xf32>, vector<1x128xf32> -> vector<2x128xf32>
    %162 = vector.extract_strided_slice %161 {offsets = [0, 0], sizes = [2, 16], strides = [1, 1]} : vector<2x128xf32> to vector<2x16xf32>
    %163 = arith.truncf %162 : vector<2x16xf32> to vector<2x16xbf16>
    %c0_71 = arith.constant 0 : index
    %c0_72 = arith.constant 0 : index
    %164 = vector.load %arg10[%c0_71, %c0_72] : memref<16x128xbf16, #tpu.memory_space<vmem>>, vector<16x128xbf16>
    %cst_73 = arith.constant dense<0.000000e+00> : vector<2x128xf32>
    %165 = tpu.matmul %163, %164, %cst_73 {dimension_numbers = #tpu.dot_dimension_numbers<[1], [0], [0], [1], [0, 0, 1, 1], [], []>} : vector<2x16xbf16>, vector<16x128xbf16>, vector<2x128xf32> -> vector<2x128xf32>
    %c0_74 = arith.constant 0 : index
    %c0_75 = arith.constant 0 : index
    %166 = vector.load %arg11[%c0_74, %c0_75] : memref<1x128xf32, #tpu.memory_space<vmem>>, vector<1x128xf32>
    %167 = vector.broadcast %166 : vector<1x128xf32> to vector<2x128xf32>
    %168 = arith.addf %165, %167 : vector<2x128xf32>
    %c0_76 = arith.constant 0 : index
    %c0_77 = arith.constant 0 : index
    %169 = vector.load %arg12[%c0_76, %c0_77] : memref<2x128xf32, #tpu.memory_space<vmem>>, vector<2x128xf32>
    tpu.vector_store %arg12[%c0_76, %c0_77], %168 {strides = array<i32>} : memref<2x128xf32, #tpu.memory_space<vmem>>, vector<2x128xf32>,
    return
  }
}

</mosaic_0001>

<llo_original>
// kernel: tpu_custom_call.1
$region0: #{tpu_custom_call.1}
  #allocation0 [shape = 'u32[]', space=smem, size = 0x4, offset = 0x4, fixed_abs, tag = 'smem constant byte address 0x4 - core index']
  #allocation1 [shape = 'u32[144,128]{1,0:T(1,128)}', space=vmem, size = 0x12000, scoped, tag = 'internal scratch']
  %s0 = inlined_call_operand.vmem [shape: bf16[32,128], index: 0, kind: input, shape index: {}]
  %s1 = inlined_call_operand.vmem [shape: s32[224,1], index: 1, kind: input, shape index: {}]
  %s2 = inlined_call_operand.vmem [shape: f32[224,2], index: 2, kind: input, shape index: {}]
  %s3 = inlined_call_operand.vmem [shape: bf16[2,16,128], index: 3, kind: input, shape index: {}]
  %s4 = inlined_call_operand.vmem [shape: bf16[2,16,128], index: 4, kind: input, shape index: {}]
  %s5 = inlined_call_operand.vmem [shape: f32[2,1,128], index: 5, kind: input, shape index: {}]
  %s6 = inlined_call_operand.vmem [shape: bf16[2,16,128], index: 6, kind: input, shape index: {}]
  %s7 = inlined_call_operand.vmem [shape: f32[2,1,128], index: 7, kind: input, shape index: {}]
  %s8 = inlined_call_operand.vmem [shape: f32[2,1,128], index: 8, kind: input, shape index: {}]
  %s9 = inlined_call_operand.vmem [shape: f32[2,1,128], index: 9, kind: input, shape index: {}]
  %s10 = inlined_call_operand.vmem [shape: bf16[16,128], index: 10, kind: input, shape index: {}]
  %s11 = inlined_call_operand.vmem [shape: f32[1,128], index: 11, kind: input, shape index: {}]
  %s12 = inlined_call_operand.hbm [shape: f32[2,128], index: 12, kind: output, shape index: {}]
  %s13 = sld [smem:[#allocation0]]
  $region58: #{tpu_custom_call.1} parent=0
    _
  %s15 = ssub.s32 1, %s13
  %s16 = scalar_select 0, %s15, %s13
  $region1: #{tpu_custom_call.1} parent=0
    #allocation2 [shape = 'u8[1024]{0}', space=vmem, size = 0x400, scoped, tag = 'output window, operand 0, single buffered']
    #allocation3 [shape = 's32[1]{0}', space=sflag, size = 0x4, scoped, tag = 'scoped memory for tpu_custom_call.1']
    %17 = vsyncpa [#allocation3], 0
    // Predicated region
    $region2: #{tpu_custom_call.1} parent=1 // pred_check
      _
    $region3: #{tpu_custom_call.1} parent=1 // pred_check_branch
      %19 = sbr.rel (0) target = $region5
    $region4: #{tpu_custom_call.1} parent=1 // pred_region
      _
    $region5: #{tpu_custom_call.1} parent=1 // pred_fallthru
      _
    // Predicated region
    $region6: #{tpu_custom_call.1} parent=1 // pred_check
      _
    $region7: #{tpu_custom_call.1} parent=1 // pred_check_branch
      %21 = sbr.rel (0) target = $region9
    $region8: #{tpu_custom_call.1} parent=1 // pred_region
      _
    $region9: #{tpu_custom_call.1} parent=1 // pred_fallthru
      _
    // Predicated region
    $region10: #{tpu_custom_call.1} parent=1 // pred_check
      _
    $region11: #{tpu_custom_call.1} parent=1 // pred_check_branch
      %23 = sbr.rel (0) target = $region13
    $region12: #{tpu_custom_call.1} parent=1 // pred_region
      _
    $region13: #{tpu_custom_call.1} parent=1 // pred_fallthru
      _
    // Predicated region
    $region14: #{tpu_custom_call.1} parent=1 // pred_check
      _
    $region15: #{tpu_custom_call.1} parent=1 // pred_check_branch
      %25 = sbr.rel (0) target = $region17
    $region16: #{tpu_custom_call.1} parent=1 // pred_region
      _
    $region17: #{tpu_custom_call.1} parent=1 // pred_fallthru
      _
    // Predicated region
    $region18: #{tpu_custom_call.1} parent=1 // pred_check
      _
    $region19: #{tpu_custom_call.1} parent=1 // pred_check_branch
      %27 = sbr.rel (0) target = $region21
    $region20: #{tpu_custom_call.1} parent=1 // pred_region
      _
    $region21: #{tpu_custom_call.1} parent=1 // pred_fallthru
      _
    // Predicated region
    $region22: #{tpu_custom_call.1} parent=1 // pred_check
      _
    $region23: #{tpu_custom_call.1} parent=1 // pred_check_branch
      %29 = sbr.rel (0) target = $region25
    $region24: #{tpu_custom_call.1} parent=1 // pred_region
      _
    $region25: #{tpu_custom_call.1} parent=1 // pred_fallthru
      _
    // Predicated region
    $region26: #{tpu_custom_call.1} parent=1 // pred_check
      _
    $region27: #{tpu_custom_call.1} parent=1 // pred_check_branch
      %31 = sbr.rel (0) target = $region29
    $region28: #{tpu_custom_call.1} parent=1 // pred_region
      _
    $region29: #{tpu_custom_call.1} parent=1 // pred_fallthru
      _
    // Predicated region
    $region30: #{tpu_custom_call.1} parent=1 // pred_check
      _
    $region31: #{tpu_custom_call.1} parent=1 // pred_check_branch
      %33 = sbr.rel (0) target = $region33
    $region32: #{tpu_custom_call.1} parent=1 // pred_region
      _
    $region33: #{tpu_custom_call.1} parent=1 // pred_fallthru
      _
    // Predicated region
    $region34: #{tpu_custom_call.1} parent=1 // pred_check
      _
    $region35: #{tpu_custom_call.1} parent=1 // pred_check_branch
      %35 = sbr.rel (0) target = $region37
    $region36: #{tpu_custom_call.1} parent=1 // pred_region
      _
    $region37: #{tpu_custom_call.1} parent=1 // pred_fallthru
      _
    // Predicated region
    $region38: #{tpu_custom_call.1} parent=1 // pred_check
      _
    $region39: #{tpu_custom_call.1} parent=1 // pred_check_branch
      %37 = sbr.rel (0) target = $region41
    $region40: #{tpu_custom_call.1} parent=1 // pred_region
      _
    $region41: #{tpu_custom_call.1} parent=1 // pred_fallthru
      _
    // Predicated region
    $region42: #{tpu_custom_call.1} parent=1 // pred_check
      _
    $region43: #{tpu_custom_call.1} parent=1 // pred_check_branch
      %39 = sbr.rel (0) target = $region45
    $region44: #{tpu_custom_call.1} parent=1 // pred_region
      _
    $region45: #{tpu_custom_call.1} parent=1 // pred_fallthru
      _
    // Predicated region
    $region46: #{tpu_custom_call.1} parent=1 // pred_check
      _
    $region47: #{tpu_custom_call.1} parent=1 // pred_check_branch
      %41 = sbr.rel (0) target = $region49
    $region48: #{tpu_custom_call.1} parent=1 // pred_region
      _
    $region49: #{tpu_custom_call.1} parent=1 // pred_fallthru
      _
    %v43 = vlaneseq
    %v44 = vand.u32 %v43, 127
    %v45 = vld [vmem:[%s1] sm:$0xff]
    %v46 = vld [vmem:[%s1 + $0x8] sm:$0xff]
    %v47 = vld [vmem:[%s1 + $0x10] sm:$0xff]
    %v48 = vld [vmem:[%s1 + $0x18] sm:$0xff]
    %v49 = vld [vmem:[%s1 + $0x20] sm:$0xff]
    %v50 = vld [vmem:[%s1 + $0x28] sm:$0xff]
    %v51 = vld [vmem:[%s1 + $0x30] sm:$0xff]
    %v52 = vld [vmem:[%s1 + $0x38] sm:$0xff]
    %v53 = vld [vmem:[%s1 + $0x40] sm:$0xff]
    %v54 = vld [vmem:[%s1 + $0x48] sm:$0xff]
    %v55 = vld [vmem:[%s1 + $0x50] sm:$0xff]
    %v56 = vld [vmem:[%s1 + $0x58] sm:$0xff]
    %v57 = vld [vmem:[%s1 + $0x60] sm:$0xff]
    %v58 = vld [vmem:[%s1 + $0x68] sm:$0xff]
    %v59 = vld [vmem:[%s1 + $0x70] sm:$0xff]
    %v60 = vld [vmem:[%s1 + $0x78] sm:$0xff]
    %v61 = vld [vmem:[%s1 + $0x80] sm:$0xff]
    %v62 = vld [vmem:[%s1 + $0x88] sm:$0xff]
    %v63 = vld [vmem:[%s1 + $0x90] sm:$0xff]
    %v64 = vld [vmem:[%s1 + $0x98] sm:$0xff]
    %v65 = vld [vmem:[%s1 + $0xa0] sm:$0xff]
    %v66 = vld [vmem:[%s1 + $0xa8] sm:$0xff]
    %v67 = vld [vmem:[%s1 + $0xb0] sm:$0xff]
    %v68 = vld [vmem:[%s1 + $0xb8] sm:$0xff]
    %v69 = vld [vmem:[%s1 + $0xc0] sm:$0xff]
    %v70 = vld [vmem:[%s1 + $0xc8] sm:$0xff]
    %v71 = vld [vmem:[%s1 + $0xd0] sm:$0xff]
    %v72 = vld [vmem:[%s1 + $0xd8] sm:$0xff]
    %73 = vset.pattern.permute.xlu0 0
    %74 = vperm.xlu0 %73, %v45
    %v75 = vpop.permute.xlu0 %74
    %76 = vset.pattern.permute.xlu0 0
    %77 = vperm.xlu0 %76, %v46
    %v78 = vpop.permute.xlu0 %77
    %79 = vset.pattern.permute.xlu0 0
    %80 = vperm.xlu0 %79, %v47
    %v81 = vpop.permute.xlu0 %80
    %82 = vset.pattern.permute.xlu0 0
    %83 = vperm.xlu0 %82, %v48
    %v84 = vpop.permute.xlu0 %83
    %85 = vset.pattern.permute.xlu0 0
    %86 = vperm.xlu0 %85, %v49
    %v87 = vpop.permute.xlu0 %86
    %88 = vset.pattern.permute.xlu0 0
    %89 = vperm.xlu0 %88, %v50
    %v90 = vpop.permute.xlu0 %89
    %91 = vset.pattern.permute.xlu0 0
    %92 = vperm.xlu0 %91, %v51
    %v93 = vpop.permute.xlu0 %92
    %94 = vset.pattern.permute.xlu0 0
    %95 = vperm.xlu0 %94, %v52
    %v96 = vpop.permute.xlu0 %95
    %97 = vset.pattern.permute.xlu0 0
    %98 = vperm.xlu0 %97, %v53
    %v99 = vpop.permute.xlu0 %98
    %100 = vset.pattern.permute.xlu0 0
    %101 = vperm.xlu0 %100, %v54
    %v102 = vpop.permute.xlu0 %101
    %103 = vset.pattern.permute.xlu0 0
    %104 = vperm.xlu0 %103, %v55
    %v105 = vpop.permute.xlu0 %104
    %106 = vset.pattern.permute.xlu0 0
    %107 = vperm.xlu0 %106, %v56
    %v108 = vpop.permute.xlu0 %107
    %109 = vset.pattern.permute.xlu0 0
    %110 = vperm.xlu0 %109, %v57
    %v111 = vpop.permute.xlu0 %110
    %112 = vset.pattern.permute.xlu0 0
    %113 = vperm.xlu0 %112, %v58
    %v114 = vpop.permute.xlu0 %113
    %115 = vset.pattern.permute.xlu0 0
    %116 = vperm.xlu0 %115, %v59
    %v117 = vpop.permute.xlu0 %116
    %118 = vset.pattern.permute.xlu0 0
    %119 = vperm.xlu0 %118, %v60
    %v120 = vpop.permute.xlu0 %119
    %121 = vset.pattern.permute.xlu0 0
    %122 = vperm.xlu0 %121, %v61
    %v123 = vpop.permute.xlu0 %122
    %124 = vset.pattern.permute.xlu0 0
    %125 = vperm.xlu0 %124, %v62
    %v126 = vpop.permute.xlu0 %125
    %127 = vset.pattern.permute.xlu0 0
    %128 = vperm.xlu0 %127, %v63
    %v129 = vpop.permute.xlu0 %128
    %130 = vset.pattern.permute.xlu0 0
    %131 = vperm.xlu0 %130, %v64
    %v132 = vpop.permute.xlu0 %131
    %133 = vset.pattern.permute.xlu0 0
    %134 = vperm.xlu0 %133, %v65
    %v135 = vpop.permute.xlu0 %134
    %136 = vset.pattern.permute.xlu0 0
    %137 = vperm.xlu0 %136, %v66
    %v138 = vpop.permute.xlu0 %137
    %139 = vset.pattern.permute.xlu0 0
    %140 = vperm.xlu0 %139, %v67
    %v141 = vpop.permute.xlu0 %140
    %142 = vset.pattern.permute.xlu0 0
    %143 = vperm.xlu0 %142, %v68
    %v144 = vpop.permute.xlu0 %143
    %145 = vset.pattern.permute.xlu0 0
    %146 = vperm.xlu0 %145, %v69
    %v147 = vpop.permute.xlu0 %146
    %148 = vset.pattern.permute.xlu0 0
    %149 = vperm.xlu0 %148, %v70
    %v150 = vpop.permute.xlu0 %149
    %151 = vset.pattern.permute.xlu0 0
    %152 = vperm.xlu0 %151, %v71
    %v153 = vpop.permute.xlu0 %152
    %154 = vset.pattern.permute.xlu0 0
    %155 = vperm.xlu0 %154, %v72
    %v156 = vpop.permute.xlu0 %155
    %vm157 = vcmp.eq.s32.totalorder %v44, %v75
    %vm158 = vcmp.eq.s32.totalorder %v44, %v78
    %vm159 = vcmp.eq.s32.totalorder %v44, %v81
    %vm160 = vcmp.eq.s32.totalorder %v44, %v84
    %vm161 = vcmp.eq.s32.totalorder %v44, %v87
    %vm162 = vcmp.eq.s32.totalorder %v44, %v90
    %vm163 = vcmp.eq.s32.totalorder %v44, %v93
    %vm164 = vcmp.eq.s32.totalorder %v44, %v96
    %vm165 = vcmp.eq.s32.totalorder %v44, %v99
    %vm166 = vcmp.eq.s32.totalorder %v44, %v102
    %vm167 = vcmp.eq.s32.totalorder %v44, %v105
    %vm168 = vcmp.eq.s32.totalorder %v44, %v108
    %vm169 = vcmp.eq.s32.totalorder %v44, %v111
    %vm170 = vcmp.eq.s32.totalorder %v44, %v114
    %vm171 = vcmp.eq.s32.totalorder %v44, %v117
    %vm172 = vcmp.eq.s32.totalorder %v44, %v120
    %vm173 = vcmp.eq.s32.totalorder %v44, %v123
    %vm174 = vcmp.eq.s32.totalorder %v44, %v126
    %vm175 = vcmp.eq.s32.totalorder %v44, %v129
    %vm176 = vcmp.eq.s32.totalorder %v44, %v132
    %vm177 = vcmp.eq.s32.totalorder %v44, %v135
    %vm178 = vcmp.eq.s32.totalorder %v44, %v138
    %vm179 = vcmp.eq.s32.totalorder %v44, %v141
    %vm180 = vcmp.eq.s32.totalorder %v44, %v144
    %vm181 = vcmp.eq.s32.totalorder %v44, %v147
    %vm182 = vcmp.eq.s32.totalorder %v44, %v150
    %vm183 = vcmp.eq.s32.totalorder %v44, %v153
    %vm184 = vcmp.eq.s32.totalorder %v44, %v156
    %v185 = vsel %vm157, 1, 0
    %v186 = vsel %vm158, 1, 0
    %v187 = vsel %vm159, 1, 0
    %v188 = vsel %vm160, 1, 0
    %v189 = vsel %vm161, 1, 0
    %v190 = vsel %vm162, 1, 0
    %v191 = vsel %vm163, 1, 0
    %v192 = vsel %vm164, 1, 0
    %v193 = vsel %vm165, 1, 0
    %v194 = vsel %vm166, 1, 0
    %v195 = vsel %vm167, 1, 0
    %v196 = vsel %vm168, 1, 0
    %v197 = vsel %vm169, 1, 0
    %v198 = vsel %vm170, 1, 0
    %v199 = vsel %vm171, 1, 0
    %v200 = vsel %vm172, 1, 0
    %v201 = vsel %vm173, 1, 0
    %v202 = vsel %vm174, 1, 0
    %v203 = vsel %vm175, 1, 0
    %v204 = vsel %vm176, 1, 0
    %v205 = vsel %vm177, 1, 0
    %v206 = vsel %vm178, 1, 0
    %v207 = vsel %vm179, 1, 0
    %v208 = vsel %vm180, 1, 0
    %v209 = vsel %vm181, 1, 0
    %v210 = vsel %vm182, 1, 0
    %v211 = vsel %vm183, 1, 0
    %v212 = vsel %vm184, 1, 0
    %v213 = vcvt.s32.f32 %v185
    %v214 = vcvt.s32.f32 %v186
    %v215 = vcvt.s32.f32 %v187
    %v216 = vcvt.s32.f32 %v188
    %v217 = vcvt.s32.f32 %v189
    %v218 = vcvt.s32.f32 %v190
    %v219 = vcvt.s32.f32 %v191
    %v220 = vcvt.s32.f32 %v192
    %v221 = vcvt.s32.f32 %v193
    %v222 = vcvt.s32.f32 %v194
    %v223 = vcvt.s32.f32 %v195
    %v224 = vcvt.s32.f32 %v196
    %v225 = vcvt.s32.f32 %v197
    %v226 = vcvt.s32.f32 %v198
    %v227 = vcvt.s32.f32 %v199
    %v228 = vcvt.s32.f32 %v200
    %v229 = vcvt.s32.f32 %v201
    %v230 = vcvt.s32.f32 %v202
    %v231 = vcvt.s32.f32 %v203
    %v232 = vcvt.s32.f32 %v204
    %v233 = vcvt.s32.f32 %v205
    %v234 = vcvt.s32.f32 %v206
    %v235 = vcvt.s32.f32 %v207
    %v236 = vcvt.s32.f32 %v208
    %v237 = vcvt.s32.f32 %v209
    %v238 = vcvt.s32.f32 %v210
    %v239 = vcvt.s32.f32 %v211
    %v240 = vcvt.s32.f32 %v212
    %vm241 = vcmp.eq.s32.totalorder %v44, 32
    %v242 = vld [vmem:[%s2] sm:$0xff]
    %v243 = vld [vmem:[%s2 + $0x8] sm:$0xff]
    %v244 = vld [vmem:[%s2 + $0x10] sm:$0xff]
    %v245 = vld [vmem:[%s2 + $0x18] sm:$0xff]
    %v246 = vld [vmem:[%s2 + $0x20] sm:$0xff]
    %v247 = vld [vmem:[%s2 + $0x28] sm:$0xff]
    %v248 = vld [vmem:[%s2 + $0x30] sm:$0xff]
    %v249 = vld [vmem:[%s2 + $0x38] sm:$0xff]
    %v250 = vld [vmem:[%s2 + $0x40] sm:$0xff]
    %v251 = vld [vmem:[%s2 + $0x48] sm:$0xff]
    %v252 = vld [vmem:[%s2 + $0x50] sm:$0xff]
    %v253 = vld [vmem:[%s2 + $0x58] sm:$0xff]
    %v254 = vld [vmem:[%s2 + $0x60] sm:$0xff]
    %v255 = vld [vmem:[%s2 + $0x68] sm:$0xff]
    %v256 = vld [vmem:[%s2 + $0x70] sm:$0xff]
    %v257 = vld [vmem:[%s2 + $0x78] sm:$0xff]
    %v258 = vld [vmem:[%s2 + $0x80] sm:$0xff]
    %v259 = vld [vmem:[%s2 + $0x88] sm:$0xff]
    %v260 = vld [vmem:[%s2 + $0x90] sm:$0xff]
    %v261 = vld [vmem:[%s2 + $0x98] sm:$0xff]
    %v262 = vld [vmem:[%s2 + $0xa0] sm:$0xff]
    %v263 = vld [vmem:[%s2 + $0xa8] sm:$0xff]
    %v264 = vld [vmem:[%s2 + $0xb0] sm:$0xff]
    %v265 = vld [vmem:[%s2 + $0xb8] sm:$0xff]
    %v266 = vld [vmem:[%s2 + $0xc0] sm:$0xff]
    %v267 = vld [vmem:[%s2 + $0xc8] sm:$0xff]
    %v268 = vld [vmem:[%s2 + $0xd0] sm:$0xff]
    %v269 = vld [vmem:[%s2 + $0xd8] sm:$0xff]
    %271 = vset.pattern.permute.xlu0 0
    %272 = vperm.xlu0 %271, %v242
    %v273 = vpop.permute.xlu0 %272
    %276 = vset.pattern.permute.xlu0 0
    %277 = vperm.xlu0 %276, %v243
    %v278 = vpop.permute.xlu0 %277
    %281 = vset.pattern.permute.xlu0 0
    %282 = vperm.xlu0 %281, %v244
    %v283 = vpop.permute.xlu0 %282
    %286 = vset.pattern.permute.xlu0 0
    %287 = vperm.xlu0 %286, %v245
    %v288 = vpop.permute.xlu0 %287
    %291 = vset.pattern.permute.xlu0 0
    %292 = vperm.xlu0 %291, %v246
    %v293 = vpop.permute.xlu0 %292
    %296 = vset.pattern.permute.xlu0 0
    %297 = vperm.xlu0 %296, %v247
    %v298 = vpop.permute.xlu0 %297
    %301 = vset.pattern.permute.xlu0 0
    %302 = vperm.xlu0 %301, %v248
    %v303 = vpop.permute.xlu0 %302
    %306 = vset.pattern.permute.xlu0 0
    %307 = vperm.xlu0 %306, %v249
    %v308 = vpop.permute.xlu0 %307
    %311 = vset.pattern.permute.xlu0 0
    %312 = vperm.xlu0 %311, %v250
    %v313 = vpop.permute.xlu0 %312
    %316 = vset.pattern.permute.xlu0 0
    %317 = vperm.xlu0 %316, %v251
    %v318 = vpop.permute.xlu0 %317
    %321 = vset.pattern.permute.xlu0 0
    %322 = vperm.xlu0 %321, %v252
    %v323 = vpop.permute.xlu0 %322
    %326 = vset.pattern.permute.xlu0 0
    %327 = vperm.xlu0 %326, %v253
    %v328 = vpop.permute.xlu0 %327
    %331 = vset.pattern.permute.xlu0 0
    %332 = vperm.xlu0 %331, %v254
    %v333 = vpop.permute.xlu0 %332
    %336 = vset.pattern.permute.xlu0 0
    %337 = vperm.xlu0 %336, %v255
    %v338 = vpop.permute.xlu0 %337
    %341 = vset.pattern.permute.xlu0 0
    %342 = vperm.xlu0 %341, %v256
    %v343 = vpop.permute.xlu0 %342
    %346 = vset.pattern.permute.xlu0 0
    %347 = vperm.xlu0 %346, %v257
    %v348 = vpop.permute.xlu0 %347
    %351 = vset.pattern.permute.xlu0 0
    %352 = vperm.xlu0 %351, %v258
    %v353 = vpop.permute.xlu0 %352
    %356 = vset.pattern.permute.xlu0 0
    %357 = vperm.xlu0 %356, %v259
    %v358 = vpop.permute.xlu0 %357
    %361 = vset.pattern.permute.xlu0 0
    %362 = vperm.xlu0 %361, %v260
    %v363 = vpop.permute.xlu0 %362
    %366 = vset.pattern.permute.xlu0 0
    %367 = vperm.xlu0 %366, %v261
    %v368 = vpop.permute.xlu0 %367
    %371 = vset.pattern.permute.xlu0 0
    %372 = vperm.xlu0 %371, %v262
    %v373 = vpop.permute.xlu0 %372
    %376 = vset.pattern.permute.xlu0 0
    %377 = vperm.xlu0 %376, %v263
    %v378 = vpop.permute.xlu0 %377
    %381 = vset.pattern.permute.xlu0 0
    %382 = vperm.xlu0 %381, %v264
    %v383 = vpop.permute.xlu0 %382
    %386 = vset.pattern.permute.xlu0 0
    %387 = vperm.xlu0 %386, %v265
    %v388 = vpop.permute.xlu0 %387
    %391 = vset.pattern.permute.xlu0 0
    %392 = vperm.xlu0 %391, %v266
    %v393 = vpop.permute.xlu0 %392
    %396 = vset.pattern.permute.xlu0 0
    %397 = vperm.xlu0 %396, %v267
    %v398 = vpop.permute.xlu0 %397
    %401 = vset.pattern.permute.xlu0 0
    %402 = vperm.xlu0 %401, %v268
    %v403 = vpop.permute.xlu0 %402
    %406 = vset.pattern.permute.xlu0 0
    %407 = vperm.xlu0 %406, %v269
    %v408 = vpop.permute.xlu0 %407
    %v410 = vsel %vm241, %v273, %v213
    %v411 = vsel %vm241, %v278, %v214
    %v412 = vsel %vm241, %v283, %v215
    %v413 = vsel %vm241, %v288, %v216
    %v414 = vsel %vm241, %v293, %v217
    %v415 = vsel %vm241, %v298, %v218
    %v416 = vsel %vm241, %v303, %v219
    %v417 = vsel %vm241, %v308, %v220
    %v418 = vsel %vm241, %v313, %v221
    %v419 = vsel %vm241, %v318, %v222
    %v420 = vsel %vm241, %v323, %v223
    %v421 = vsel %vm241, %v328, %v224
    %v422 = vsel %vm241, %v333, %v225
    %v423 = vsel %vm241, %v338, %v226
    %v424 = vsel %vm241, %v343, %v227
    %v425 = vsel %vm241, %v348, %v228
    %v426 = vsel %vm241, %v353, %v229
    %v427 = vsel %vm241, %v358, %v230
    %v428 = vsel %vm241, %v363, %v231
    %v429 = vsel %vm241, %v368, %v232
    %v430 = vsel %vm241, %v373, %v233
    %v431 = vsel %vm241, %v378, %v234
    %v432 = vsel %vm241, %v383, %v235
    %v433 = vsel %vm241, %v388, %v236
    %v434 = vsel %vm241, %v393, %v237
    %v435 = vsel %vm241, %v398, %v238
    %v436 = vsel %vm241, %v403, %v239
    %v437 = vsel %vm241, %v408, %v240
    %vm438 = vcmp.eq.s32.totalorder %v44, 33
    %439 = vset.pattern.permute.xlu0 1
    %440 = vperm.xlu0 %439, %v242
    %v441 = vpop.permute.xlu0 %440
    %443 = vset.pattern.permute.xlu0 1
    %444 = vperm.xlu0 %443, %v243
    %v445 = vpop.permute.xlu0 %444
    %447 = vset.pattern.permute.xlu0 1
    %448 = vperm.xlu0 %447, %v244
    %v449 = vpop.permute.xlu0 %448
    %451 = vset.pattern.permute.xlu0 1
    %452 = vperm.xlu0 %451, %v245
    %v453 = vpop.permute.xlu0 %452
    %455 = vset.pattern.permute.xlu0 1
    %456 = vperm.xlu0 %455, %v246
    %v457 = vpop.permute.xlu0 %456
    %459 = vset.pattern.permute.xlu0 1
    %460 = vperm.xlu0 %459, %v247
    %v461 = vpop.permute.xlu0 %460
    %463 = vset.pattern.permute.xlu0 1
    %464 = vperm.xlu0 %463, %v248
    %v465 = vpop.permute.xlu0 %464
    %467 = vset.pattern.permute.xlu0 1
    %468 = vperm.xlu0 %467, %v249
    %v469 = vpop.permute.xlu0 %468
    %471 = vset.pattern.permute.xlu0 1
    %472 = vperm.xlu0 %471, %v250
    %v473 = vpop.permute.xlu0 %472
    %475 = vset.pattern.permute.xlu0 1
    %476 = vperm.xlu0 %475, %v251
    %v477 = vpop.permute.xlu0 %476
    %479 = vset.pattern.permute.xlu0 1
    %480 = vperm.xlu0 %479, %v252
    %v481 = vpop.permute.xlu0 %480
    %483 = vset.pattern.permute.xlu0 1
    %484 = vperm.xlu0 %483, %v253
    %v485 = vpop.permute.xlu0 %484
    %487 = vset.pattern.permute.xlu0 1
    %488 = vperm.xlu0 %487, %v254
    %v489 = vpop.permute.xlu0 %488
    %491 = vset.pattern.permute.xlu0 1
    %492 = vperm.xlu0 %491, %v255
    %v493 = vpop.permute.xlu0 %492
    %495 = vset.pattern.permute.xlu0 1
    %496 = vperm.xlu0 %495, %v256
    %v497 = vpop.permute.xlu0 %496
    %499 = vset.pattern.permute.xlu0 1
    %500 = vperm.xlu0 %499, %v257
    %v501 = vpop.permute.xlu0 %500
    %503 = vset.pattern.permute.xlu0 1
    %504 = vperm.xlu0 %503, %v258
    %v505 = vpop.permute.xlu0 %504
    %507 = vset.pattern.permute.xlu0 1
    %508 = vperm.xlu0 %507, %v259
    %v509 = vpop.permute.xlu0 %508
    %511 = vset.pattern.permute.xlu0 1
    %512 = vperm.xlu0 %511, %v260
    %v513 = vpop.permute.xlu0 %512
    %515 = vset.pattern.permute.xlu0 1
    %516 = vperm.xlu0 %515, %v261
    %v517 = vpop.permute.xlu0 %516
    %519 = vset.pattern.permute.xlu0 1
    %520 = vperm.xlu0 %519, %v262
    %v521 = vpop.permute.xlu0 %520
    %523 = vset.pattern.permute.xlu0 1
    %524 = vperm.xlu0 %523, %v263
    %v525 = vpop.permute.xlu0 %524
    %527 = vset.pattern.permute.xlu0 1
    %528 = vperm.xlu0 %527, %v264
    %v529 = vpop.permute.xlu0 %528
    %531 = vset.pattern.permute.xlu0 1
    %532 = vperm.xlu0 %531, %v265
    %v533 = vpop.permute.xlu0 %532
    %535 = vset.pattern.permute.xlu0 1
    %536 = vperm.xlu0 %535, %v266
    %v537 = vpop.permute.xlu0 %536
    %539 = vset.pattern.permute.xlu0 1
    %540 = vperm.xlu0 %539, %v267
    %v541 = vpop.permute.xlu0 %540
    %543 = vset.pattern.permute.xlu0 1
    %544 = vperm.xlu0 %543, %v268
    %v545 = vpop.permute.xlu0 %544
    %547 = vset.pattern.permute.xlu0 1
    %548 = vperm.xlu0 %547, %v269
    %v549 = vpop.permute.xlu0 %548
    %v551 = vsel %vm438, %v441, %v410
    %v552 = vsel %vm438, %v445, %v411
    %v553 = vsel %vm438, %v449, %v412
    %v554 = vsel %vm438, %v453, %v413
    %v555 = vsel %vm438, %v457, %v414
    %v556 = vsel %vm438, %v461, %v415
    %v557 = vsel %vm438, %v465, %v416
    %v558 = vsel %vm438, %v469, %v417
    %v559 = vsel %vm438, %v473, %v418
    %v560 = vsel %vm438, %v477, %v419
    %v561 = vsel %vm438, %v481, %v420
    %v562 = vsel %vm438, %v485, %v421
    %v563 = vsel %vm438, %v489, %v422
    %v564 = vsel %vm438, %v493, %v423
    %v565 = vsel %vm438, %v497, %v424
    %v566 = vsel %vm438, %v501, %v425
    %v567 = vsel %vm438, %v505, %v426
    %v568 = vsel %vm438, %v509, %v427
    %v569 = vsel %vm438, %v513, %v428
    %v570 = vsel %vm438, %v517, %v429
    %v571 = vsel %vm438, %v521, %v430
    %v572 = vsel %vm438, %v525, %v431
    %v573 = vsel %vm438, %v529, %v432
    %v574 = vsel %vm438, %v533, %v433
    %v575 = vsel %vm438, %v537, %v434
    %v576 = vsel %vm438, %v541, %v435
    %v577 = vsel %vm438, %v545, %v436
    %v578 = vsel %vm438, %v549, %v437
    %v579 = vpack.c.bf16 %v552, %v551
    %v580 = vpack.c.bf16 %v554, %v553
    %v581 = vpack.c.bf16 %v556, %v555
    %v582 = vpack.c.bf16 %v558, %v557
    %v583 = vpack.c.bf16 %v560, %v559
    %v584 = vpack.c.bf16 %v562, %v561
    %v585 = vpack.c.bf16 %v564, %v563
    %v586 = vpack.c.bf16 %v566, %v565
    %v587 = vpack.c.bf16 %v568, %v567
    %v588 = vpack.c.bf16 %v570, %v569
    %v589 = vpack.c.bf16 %v572, %v571
    %v590 = vpack.c.bf16 %v574, %v573
    %v591 = vpack.c.bf16 %v576, %v575
    %v592 = vpack.c.bf16 %v578, %v577
    %v593 = vld [vmem:[%s0] sm:$0xf]
    %v594 = vld [vmem:[%s0 + $0x4] sm:$0xf]
    %v595 = vld [vmem:[%s0 + $0x8] sm:$0xf]
    %v596 = vld [vmem:[%s0 + $0xc] sm:$0xf]
    %v597 = vld [vmem:[%s3] sm:$0xf]
    %v598 = vld [vmem:[%s3 + $0x4] sm:$0xf]
    %v603 = vunpack.c.l.b16 %v593
    %v604 = vunpack.c.l.b16 %v594
    %v605 = vunpack.c.l.b16 %v595
    %v606 = vunpack.c.l.b16 %v596
    %v607 = vpack.c.b16 %v604, %v603
    %v608 = vpack.c.b16 %v606, %v605
    %v611 = vunpack.c.l.b16 %v597
    %v612 = vunpack.c.l.b16 %v598
    %v613 = vpack.c.b16 %v612, %v611
    %vm615 = vcmask 130048
    %v617 = vsel %vm615, %v607, 0
    %v620 = vsel %vm615, %v608, 0
    %622 = vmatprep.subr.bf16.mxu0 0
    %623 = vmatpush1.bf16.msra.mxu0 0
    %624 = vmatprep.subr.bf16.mxu0 0
    %625 = vmatpush1.bf16.msra.mxu0 0
    %626 = vmatprep.subr.bf16.mxu0 0
    %627 = vmatpush1.bf16.msra.mxu0 0
    %628 = vmatprep.subr.bf16.mxu0 0
    %629 = vmatpush1.bf16.msra.mxu0 0
    %630 = vmatprep.subr.bf16.mxu0 0
    %631 = vmatpush1.bf16.msra.mxu0 0
    %632 = vmatprep.subr.bf16.mxu0 0
    %633 = vmatpush1.bf16.msra.mxu0 0
    %634 = vmatprep.subr.bf16.mxu0 0
    %635 = vmatpush1.bf16.msra.mxu0 0
    %636 = vmatprep.subr.bf16.mxu0 0
    %637 = vmatpush1.bf16.msra.mxu0 %v613
    %638 = vmatprep.subr.bf16.mxu0 0
    %639 = vmatpush2.bf16.msra.mxu0 0
    %640 = vmatprep.subr.bf16.mxu0 0
    %641 = vmatpush2.bf16.msra.mxu0 0
    %642 = vmatprep.subr.bf16.mxu0 0
    %643 = vmatpush2.bf16.msra.mxu0 0
    %644 = vmatprep.subr.bf16.mxu0 0
    %645 = vmatpush2.bf16.msra.mxu0 0
    %646 = vmatprep.subr.bf16.mxu0 0
    %647 = vmatpush2.bf16.msra.mxu0 0
    %648 = vmatprep.subr.bf16.mxu0 0
    %649 = vmatpush2.bf16.msra.mxu0 0
    %650 = vmatprep.subr.bf16.mxu0 0
    %651 = vmatpush2.bf16.msra.mxu0 0
    %652 = vmatprep.subr.bf16.mxu0 0
    %653 = vmatpush2.bf16.msra.mxu0 0
    %654 = vmatprep.mubr.bf16.mxu0 0
    %655 = vmatmul.mubr.bf16.gmra.mxu0 %v617
    %v656 = vpop.f32.mrf.mxu0
    %v657 = vadd.f32 0.0, %v656
    %v658 = vpop.f32.mrf.mxu0
    %v659 = vpop.f32.mrf.mxu0
    %v660 = vadd.f32 0.0, %v659
    %v661 = vpop.f32.mrf.mxu0
    %662 = vmatprep.mubr.bf16.mxu0 0
    %663 = vmatmul.mubr.bf16.gmra.mxu0 %v620
    %v664 = vpop.f32.mrf.mxu0
    %v665 = vadd.f32 0.0, %v664
    %v666 = vpop.f32.mrf.mxu0
    %v667 = vpop.f32.mrf.mxu0
    %v668 = vadd.f32 0.0, %v667
    %v669 = vpop.f32.mrf.mxu0
    %670 = vdwg.mxu0
    %v671 = vpack.c.bf16 %v660, %v657
    %v672 = vpack.c.bf16 %v668, %v665
    %v673 = vld [vmem:[%s4] sm:$0xf]
    %v674 = vld [vmem:[%s4 + $0x4] sm:$0xf]
    %v677 = vunpack.c.l.b16 %v673
    %v678 = vunpack.c.l.b16 %v674
    %v679 = vpack.c.b16 %v678, %v677
    %v681 = vld [vmem:[%s5] sm:$0x1]
    %v683 = vlaneseq
    %v684 = vshrl.u32 %v683, 7
    %v685 = vsub.s32 0, %v684
    %v686 = vrot.slane %v681, %v685
    %vm688 = vcmask 392192
    %v690 = vsel %vm688, %v579, 0
    %v693 = vsel %vm688, %v580, 0
    %v696 = vsel %vm688, %v581, 0
    %v699 = vsel %vm688, %v582, 0
    %v702 = vsel %vm688, %v583, 0
    %v705 = vsel %vm688, %v584, 0
    %v708 = vsel %vm688, %v585, 0
    %v711 = vsel %vm688, %v586, 0
    %v714 = vsel %vm688, %v587, 0
    %v717 = vsel %vm688, %v588, 0
    %v720 = vsel %vm688, %v589, 0
    %v723 = vsel %vm688, %v590, 0
    %v726 = vsel %vm688, %v591, 0
    %v729 = vsel %vm688, %v592, 0
    %731 = vmatprep.subr.bf16.mxu0 0
    %732 = vmatpush1.bf16.msra.mxu0 0
    %733 = vmatprep.subr.bf16.mxu0 0
    %734 = vmatpush1.bf16.msra.mxu0 0
    %735 = vmatprep.subr.bf16.mxu0 0
    %736 = vmatpush1.bf16.msra.mxu0 0
    %737 = vmatprep.subr.bf16.mxu0 0
    %738 = vmatpush1.bf16.msra.mxu0 0
    %739 = vmatprep.subr.bf16.mxu0 0
    %740 = vmatpush1.bf16.msra.mxu0 0
    %741 = vmatprep.subr.bf16.mxu0 0
    %742 = vmatpush1.bf16.msra.mxu0 %v679
    %743 = vmatprep.subr.bf16.mxu0 0
    %744 = vmatpush1.bf16.msra.mxu0 %v672
    %745 = vmatprep.subr.bf16.mxu0 0
    %746 = vmatpush1.bf16.msra.mxu0 %v671
    %747 = vmatprep.subr.bf16.mxu0 0
    %748 = vmatpush2.bf16.msra.mxu0 0
    %749 = vmatprep.subr.bf16.mxu0 0
    %750 = vmatpush2.bf16.msra.mxu0 0
    %751 = vmatprep.subr.bf16.mxu0 0
    %752 = vmatpush2.bf16.msra.mxu0 0
    %753 = vmatprep.subr.bf16.mxu0 0
    %754 = vmatpush2.bf16.msra.mxu0 0
    %755 = vmatprep.subr.bf16.mxu0 0
    %756 = vmatpush2.bf16.msra.mxu0 0
    %757 = vmatprep.subr.bf16.mxu0 0
    %758 = vmatpush2.bf16.msra.mxu0 0
    %759 = vmatprep.subr.bf16.mxu0 0
    %760 = vmatpush2.bf16.msra.mxu0 0
    %761 = vmatprep.subr.bf16.mxu0 0
    %762 = vmatpush2.bf16.msra.mxu0 0
    %763 = vmatprep.mubr.bf16.mxu0 0
    %764 = vmatmul.mubr.bf16.gmra.mxu0 %v690
    %v765 = vpop.f32.mrf.mxu0
    %v766 = vadd.f32 %v686, %v765
    %v767 = vpop.f32.mrf.mxu0
    %v768 = vpop.f32.mrf.mxu0
    %v769 = vadd.f32 %v686, %v768
    %v770 = vpop.f32.mrf.mxu0
    %771 = vmatprep.mubr.bf16.mxu0 0
    %772 = vmatmul.mubr.bf16.gmra.mxu0 %v693
    %v773 = vpop.f32.mrf.mxu0
    %v774 = vadd.f32 %v686, %v773
    %v775 = vpop.f32.mrf.mxu0
    %v776 = vpop.f32.mrf.mxu0
    %v777 = vadd.f32 %v686, %v776
    %v778 = vpop.f32.mrf.mxu0
    %779 = vmatprep.mubr.bf16.mxu0 0
    %780 = vmatmul.mubr.bf16.gmra.mxu0 %v696
    %v781 = vpop.f32.mrf.mxu0
    %v782 = vadd.f32 %v686, %v781
    %v783 = vpop.f32.mrf.mxu0
    %v784 = vpop.f32.mrf.mxu0
    %v785 = vadd.f32 %v686, %v784
    %v786 = vpop.f32.mrf.mxu0
    %787 = vmatprep.mubr.bf16.mxu0 0
    %788 = vmatmul.mubr.bf16.gmra.mxu0 %v699
    %v789 = vpop.f32.mrf.mxu0
    %v790 = vadd.f32 %v686, %v789
    %v791 = vpop.f32.mrf.mxu0
    %v792 = vpop.f32.mrf.mxu0
    %v793 = vadd.f32 %v686, %v792
    %v794 = vpop.f32.mrf.mxu0
    %795 = vmatprep.mubr.bf16.mxu0 0
    %796 = vmatmul.mubr.bf16.gmra.mxu0 %v702
    %v797 = vpop.f32.mrf.mxu0
    %v798 = vadd.f32 %v686, %v797
    %v799 = vpop.f32.mrf.mxu0
    %v800 = vpop.f32.mrf.mxu0
    %v801 = vadd.f32 %v686, %v800
    %v802 = vpop.f32.mrf.mxu0
    %803 = vmatprep.mubr.bf16.mxu0 0
    %804 = vmatmul.mubr.bf16.gmra.mxu0 %v705
    %v805 = vpop.f32.mrf.mxu0
    %v806 = vadd.f32 %v686, %v805
    %v807 = vpop.f32.mrf.mxu0
    %v808 = vpop.f32.mrf.mxu0
    %v809 = vadd.f32 %v686, %v808
    %v810 = vpop.f32.mrf.mxu0
    %811 = vmatprep.mubr.bf16.mxu0 0
    %812 = vmatmul.mubr.bf16.gmra.mxu0 %v708
    %v813 = vpop.f32.mrf.mxu0
    %v814 = vadd.f32 %v686, %v813
    %v815 = vpop.f32.mrf.mxu0
    %v816 = vpop.f32.mrf.mxu0
    %v817 = vadd.f32 %v686, %v816
    %v818 = vpop.f32.mrf.mxu0
    %819 = vmatprep.mubr.bf16.mxu0 0
    %820 = vmatmul.mubr.bf16.gmra.mxu0 %v711
    %v821 = vpop.f32.mrf.mxu0
    %v822 = vadd.f32 %v686, %v821
    %v823 = vpop.f32.mrf.mxu0
    %v824 = vpop.f32.mrf.mxu0
    %v825 = vadd.f32 %v686, %v824
    %v826 = vpop.f32.mrf.mxu0
    %827 = vmatprep.mubr.bf16.mxu0 0
    %828 = vmatmul.mubr.bf16.gmra.mxu0 %v714
    %v829 = vpop.f32.mrf.mxu0
    %v830 = vadd.f32 %v686, %v829
    %v831 = vpop.f32.mrf.mxu0
    %v832 = vpop.f32.mrf.mxu0
    %v833 = vadd.f32 %v686, %v832
    %v834 = vpop.f32.mrf.mxu0
    %835 = vmatprep.mubr.bf16.mxu0 0
    %836 = vmatmul.mubr.bf16.gmra.mxu0 %v717
    %v837 = vpop.f32.mrf.mxu0
    %v838 = vadd.f32 %v686, %v837
    %v839 = vpop.f32.mrf.mxu0
    %v840 = vpop.f32.mrf.mxu0
    %v841 = vadd.f32 %v686, %v840
    %v842 = vpop.f32.mrf.mxu0
    %843 = vmatprep.mubr.bf16.mxu0 0
    %844 = vmatmul.mubr.bf16.gmra.mxu0 %v720
    %v845 = vpop.f32.mrf.mxu0
    %v846 = vadd.f32 %v686, %v845
    %v847 = vpop.f32.mrf.mxu0
    %v848 = vpop.f32.mrf.mxu0
    %v849 = vadd.f32 %v686, %v848
    %v850 = vpop.f32.mrf.mxu0
    %851 = vmatprep.mubr.bf16.mxu0 0
    %852 = vmatmul.mubr.bf16.gmra.mxu0 %v723
    %v853 = vpop.f32.mrf.mxu0
    %v854 = vadd.f32 %v686, %v853
    %v855 = vpop.f32.mrf.mxu0
    %v856 = vpop.f32.mrf.mxu0
    %v857 = vadd.f32 %v686, %v856
    %v858 = vpop.f32.mrf.mxu0
    %859 = vmatprep.mubr.bf16.mxu0 0
    %860 = vmatmul.mubr.bf16.gmra.mxu0 %v726
    %v861 = vpop.f32.mrf.mxu0
    %v862 = vadd.f32 %v686, %v861
    %v863 = vpop.f32.mrf.mxu0
    %v864 = vpop.f32.mrf.mxu0
    %v865 = vadd.f32 %v686, %v864
    %v866 = vpop.f32.mrf.mxu0
    %867 = vmatprep.mubr.bf16.mxu0 0
    %868 = vmatmul.mubr.bf16.gmra.mxu0 %v729
    %v869 = vpop.f32.mrf.mxu0
    %v870 = vadd.f32 %v686, %v869
    %v871 = vpop.f32.mrf.mxu0
    %v872 = vpop.f32.mrf.mxu0
    %v873 = vadd.f32 %v686, %v872
    %v874 = vpop.f32.mrf.mxu0
    %875 = vdwg.mxu0
    %v876 = vmax.f32 %v766, 0.0
    %v877 = vmax.f32 %v769, 0.0
    %v878 = vmax.f32 %v774, 0.0
    %v879 = vmax.f32 %v777, 0.0
    %v880 = vmax.f32 %v782, 0.0
    %v881 = vmax.f32 %v785, 0.0
    %v882 = vmax.f32 %v790, 0.0
    %v883 = vmax.f32 %v793, 0.0
    %v884 = vmax.f32 %v798, 0.0
    %v885 = vmax.f32 %v801, 0.0
    %v886 = vmax.f32 %v806, 0.0
    %v887 = vmax.f32 %v809, 0.0
    %v888 = vmax.f32 %v814, 0.0
    %v889 = vmax.f32 %v817, 0.0
    %v890 = vmax.f32 %v822, 0.0
    %v891 = vmax.f32 %v825, 0.0
    %v892 = vmax.f32 %v830, 0.0
    %v893 = vmax.f32 %v833, 0.0
    %v894 = vmax.f32 %v838, 0.0
    %v895 = vmax.f32 %v841, 0.0
    %v896 = vmax.f32 %v846, 0.0
    %v897 = vmax.f32 %v849, 0.0
    %v898 = vmax.f32 %v854, 0.0
    %v899 = vmax.f32 %v857, 0.0
    %v900 = vmax.f32 %v862, 0.0
    %v901 = vmax.f32 %v865, 0.0
    %v902 = vmax.f32 %v870, 0.0
    %v903 = vmax.f32 %v873, 0.0
    %v904 = vmax.f32 %v876, %v880
    %v905 = vmax.f32 %v877, %v881
    %v906 = vmax.f32 %v878, %v882
    %v907 = vmax.f32 %v879, %v883
    %v908 = vmax.f32 %v884, %v888
    %v909 = vmax.f32 %v885, %v889
    %v910 = vmax.f32 %v886, %v890
    %v911 = vmax.f32 %v887, %v891
    %v912 = vmax.f32 %v892, %v896
    %v913 = vmax.f32 %v893, %v897
    %v914 = vmax.f32 %v894, %v898
    %v915 = vmax.f32 %v895, %v899
    %v916 = vmax.f32 %v904, %v908
    %v917 = vmax.f32 %v905, %v909
    %v918 = vmax.f32 %v906, %v910
    %v919 = vmax.f32 %v907, %v911
    %v920 = vmax.f32 %v912, %v900
    %v921 = vmax.f32 %v913, %v901
    %v922 = vmax.f32 %v914, %v902
    %v923 = vmax.f32 %v915, %v903
    %v924 = vmax.f32 %v916, %v920
    %v925 = vmax.f32 %v917, %v921
    %v926 = vmax.f32 %v918, %v922
    %v927 = vmax.f32 %v919, %v923
    %v928 = vpack.c.bf16 %v925, %v924
    %v929 = vpack.c.bf16 %v927, %v926
    %v930 = vld [vmem:[%s6] sm:$0xf]
    %v931 = vld [vmem:[%s6 + $0x4] sm:$0xf]
    %v932 = vld [vmem:[%s7] sm:$0x1]
    %v934 = vlaneseq
    %v935 = vshrl.u32 %v934, 7
    %v936 = vsub.s32 0, %v935
    %v937 = vrot.slane %v932, %v936
    %v941 = vunpack.c.l.b16 %v930
    %v942 = vunpack.c.l.b16 %v931
    %v943 = vpack.c.b16 %v942, %v941
    %v946 = vsel %vm615, %v928, 0
    %v949 = vsel %vm615, %v929, 0
    %951 = vmatprep.subr.bf16.mxu0 0
    %952 = vmatpush1.bf16.msra.mxu0 0
    %953 = vmatprep.subr.bf16.mxu0 0
    %954 = vmatpush1.bf16.msra.mxu0 0
    %955 = vmatprep.subr.bf16.mxu0 0
    %956 = vmatpush1.bf16.msra.mxu0 0
    %957 = vmatprep.subr.bf16.mxu0 0
    %958 = vmatpush1.bf16.msra.mxu0 0
    %959 = vmatprep.subr.bf16.mxu0 0
    %960 = vmatpush1.bf16.msra.mxu0 0
    %961 = vmatprep.subr.bf16.mxu0 0
    %962 = vmatpush1.bf16.msra.mxu0 0
    %963 = vmatprep.subr.bf16.mxu0 0
    %964 = vmatpush1.bf16.msra.mxu0 0
    %965 = vmatprep.subr.bf16.mxu0 0
    %966 = vmatpush1.bf16.msra.mxu0 %v943
    %967 = vmatprep.subr.bf16.mxu0 0
    %968 = vmatpush2.bf16.msra.mxu0 0
    %969 = vmatprep.subr.bf16.mxu0 0
    %970 = vmatpush2.bf16.msra.mxu0 0
    %971 = vmatprep.subr.bf16.mxu0 0
    %972 = vmatpush2.bf16.msra.mxu0 0
    %973 = vmatprep.subr.bf16.mxu0 0
    %974 = vmatpush2.bf16.msra.mxu0 0
    %975 = vmatprep.subr.bf16.mxu0 0
    %976 = vmatpush2.bf16.msra.mxu0 0
    %977 = vmatprep.subr.bf16.mxu0 0
    %978 = vmatpush2.bf16.msra.mxu0 0
    %979 = vmatprep.subr.bf16.mxu0 0
    %980 = vmatpush2.bf16.msra.mxu0 0
    %981 = vmatprep.subr.bf16.mxu0 0
    %982 = vmatpush2.bf16.msra.mxu0 0
    %983 = vmatprep.mubr.bf16.mxu0 0
    %984 = vmatmul.mubr.bf16.gmra.mxu0 %v946
    %v985 = vpop.f32.mrf.mxu0
    %v986 = vadd.f32 %v937, %v985
    %v987 = vpop.f32.mrf.mxu0
    %v988 = vpop.f32.mrf.mxu0
    %v989 = vadd.f32 %v937, %v988
    %v990 = vpop.f32.mrf.mxu0
    %991 = vmatprep.mubr.bf16.mxu0 0
    %992 = vmatmul.mubr.bf16.gmra.mxu0 %v949
    %v993 = vpop.f32.mrf.mxu0
    %v994 = vadd.f32 %v937, %v993
    %v995 = vpop.f32.mrf.mxu0
    %v996 = vpop.f32.mrf.mxu0
    %v997 = vadd.f32 %v937, %v996
    %v998 = vpop.f32.mrf.mxu0
    %999 = vdwg.mxu0
    %v1000 = vmax.f32 %v986, 0.0
    %v1001 = vmax.f32 %v989, 0.0
    %v1002 = vmax.f32 %v994, 0.0
    %v1003 = vmax.f32 %v997, 0.0
    %v1004 = vadd.f32 %v1000, %v1001
    %v1005 = vadd.f32 %v1004, %v1002
    %v1006 = vadd.f32 %v1005, %v1003
    %v1007 = vrot.slane %v1006, 4
    %v1008 = vadd.f32 %v1006, %v1007
    %v1009 = vrot.slane %v1008, 2
    %v1010 = vadd.f32 %v1008, %v1009
    %v1011 = vrot.slane %v1010, 1
    %v1012 = vadd.f32 %v1010, %v1011
    %v1013 = vrcp.pop 32.0
    %v1014 = vmul.f32 %v1012, %v1013
    %v1015 = vmul.f32 %v1000, %v1000
    %v1016 = vmul.f32 %v1001, %v1001
    %v1017 = vmul.f32 %v1002, %v1002
    %v1018 = vmul.f32 %v1003, %v1003
    %v1019 = vadd.f32 %v1015, %v1016
    %v1020 = vadd.f32 %v1019, %v1017
    %v1021 = vadd.f32 %v1020, %v1018
    %v1022 = vrot.slane %v1021, 4
    %v1023 = vadd.f32 %v1021, %v1022
    %v1024 = vrot.slane %v1023, 2
    %v1025 = vadd.f32 %v1023, %v1024
    %v1026 = vrot.slane %v1025, 1
    %v1027 = vadd.f32 %v1025, %v1026
    %v1028 = vmul.f32 %v1027, %v1013
    %v1029 = vmul.f32 %v1014, %v1014
    %v1030 = vsub.f32 %v1028, %v1029
    %v1031 = vsub.f32 %v1000, %v1014
    %v1032 = vsub.f32 %v1001, %v1014
    %v1033 = vsub.f32 %v1002, %v1014
    %v1034 = vsub.f32 %v1003, %v1014
    %v1035 = vadd.f32 %v1030, 1e-05
    %v1036 = vrsqrt.pop %v1035
    %v1037 = vmul.f32 %v1031, %v1036
    %v1038 = vmul.f32 %v1032, %v1036
    %v1039 = vmul.f32 %v1033, %v1036
    %v1040 = vmul.f32 %v1034, %v1036
    %v1041 = vld [vmem:[%s8] sm:$0x1]
    %v1043 = vlaneseq
    %v1044 = vshrl.u32 %v1043, 7
    %v1045 = vsub.s32 0, %v1044
    %v1046 = vrot.slane %v1041, %v1045
    %v1048 = vmul.f32 %v1037, %v1046
    %v1049 = vmul.f32 %v1038, %v1046
    %v1050 = vmul.f32 %v1039, %v1046
    %v1051 = vmul.f32 %v1040, %v1046
    %v1052 = vld [vmem:[%s9] sm:$0x1]
    %v1054 = vlaneseq
    %v1055 = vshrl.u32 %v1054, 7
    %v1056 = vsub.s32 0, %v1055
    %v1057 = vrot.slane %v1052, %v1056
    %v1059 = vadd.f32 %v1048, %v1057
    %v1060 = vadd.f32 %v1049, %v1057
    %v1061 = vadd.f32 %v1050, %v1057
    %v1062 = vadd.f32 %v1051, %v1057
    %v1063 = vmax.f32 %v1059, 0.0
    %v1064 = vmax.f32 %v1060, 0.0
    %v1065 = vmax.f32 %v1061, 0.0
    %v1066 = vmax.f32 %v1062, 0.0
    %v1067 = vpack.c.bf16 %v1064, %v1063
    %v1068 = vpack.c.bf16 %v1066, %v1065
    %s1069 = scalar_lea.vmem %s3, 8
    %v1070 = vld [vmem:[%s1069] sm:$0xf]
    %v1071 = vld [vmem:[%s1069 + $0x4] sm:$0xf]
    %v1074 = vunpack.c.l.b16 %v1070
    %v1075 = vunpack.c.l.b16 %v1071
    %v1076 = vpack.c.b16 %v1075, %v1074
    %v1079 = vsel %vm615, %v1067, 0
    %v1082 = vsel %vm615, %v1068, 0
    %1084 = vmatprep.subr.bf16.mxu0 0
    %1085 = vmatpush1.bf16.msra.mxu0 0
    %1086 = vmatprep.subr.bf16.mxu0 0
    %1087 = vmatpush1.bf16.msra.mxu0 0
    %1088 = vmatprep.subr.bf16.mxu0 0
    %1089 = vmatpush1.bf16.msra.mxu0 0
    %1090 = vmatprep.subr.bf16.mxu0 0
    %1091 = vmatpush1.bf16.msra.mxu0 0
    %1092 = vmatprep.subr.bf16.mxu0 0
    %1093 = vmatpush1.bf16.msra.mxu0 0
    %1094 = vmatprep.subr.bf16.mxu0 0
    %1095 = vmatpush1.bf16.msra.mxu0 0
    %1096 = vmatprep.subr.bf16.mxu0 0
    %1097 = vmatpush1.bf16.msra.mxu0 0
    %1098 = vmatprep.subr.bf16.mxu0 0
    %1099 = vmatpush1.bf16.msra.mxu0 %v1076
    %1100 = vmatprep.subr.bf16.mxu0 0
    %1101 = vmatpush2.bf16.msra.mxu0 0
    %1102 = vmatprep.subr.bf16.mxu0 0
    %1103 = vmatpush2.bf16.msra.mxu0 0
    %1104 = vmatprep.subr.bf16.mxu0 0
    %1105 = vmatpush2.bf16.msra.mxu0 0
    %1106 = vmatprep.subr.bf16.mxu0 0
    %1107 = vmatpush2.bf16.msra.mxu0 0
    %1108 = vmatprep.subr.bf16.mxu0 0
    %1109 = vmatpush2.bf16.msra.mxu0 0
    %1110 = vmatprep.subr.bf16.mxu0 0
    %1111 = vmatpush2.bf16.msra.mxu0 0
    %1112 = vmatprep.subr.bf16.mxu0 0
    %1113 = vmatpush2.bf16.msra.mxu0 0
    %1114 = vmatprep.subr.bf16.mxu0 0
    %1115 = vmatpush2.bf16.msra.mxu0 0
    %1116 = vmatprep.mubr.bf16.mxu0 0
    %1117 = vmatmul.mubr.bf16.gmra.mxu0 %v1079
    %v1118 = vpop.f32.mrf.mxu0
    %v1119 = vadd.f32 0.0, %v1118
    %v1120 = vpop.f32.mrf.mxu0
    %v1121 = vpop.f32.mrf.mxu0
    %v1122 = vadd.f32 0.0, %v1121
    %v1123 = vpop.f32.mrf.mxu0
    %1124 = vmatprep.mubr.bf16.mxu0 0
    %1125 = vmatmul.mubr.bf16.gmra.mxu0 %v1082
    %v1126 = vpop.f32.mrf.mxu0
    %v1127 = vadd.f32 0.0, %v1126
    %v1128 = vpop.f32.mrf.mxu0
    %v1129 = vpop.f32.mrf.mxu0
    %v1130 = vadd.f32 0.0, %v1129
    %v1131 = vpop.f32.mrf.mxu0
    %1132 = vdwg.mxu0
    %v1133 = vpack.c.bf16 %v1122, %v1119
    %v1134 = vpack.c.bf16 %v1130, %v1127
    %s1135 = scalar_lea.vmem %s4, 8
    %v1136 = vld [vmem:[%s1135] sm:$0xf]
    %v1137 = vld [vmem:[%s1135 + $0x4] sm:$0xf]
    %v1140 = vunpack.c.l.b16 %v1136
    %v1141 = vunpack.c.l.b16 %v1137
    %v1142 = vpack.c.b16 %v1141, %v1140
    %s1144 = scalar_lea.vmem %s5, 1
    %v1145 = vld [vmem:[%s1144] sm:$0x1]
    %v1147 = vlaneseq
    %v1148 = vshrl.u32 %v1147, 7
    %v1149 = vsub.s32 0, %v1148
    %v1150 = vrot.slane %v1145, %v1149
    %1152 = vmatprep.subr.bf16.mxu0 0
    %1153 = vmatpush1.bf16.msra.mxu0 0
    %1154 = vmatprep.subr.bf16.mxu0 0
    %1155 = vmatpush1.bf16.msra.mxu0 0
    %1156 = vmatprep.subr.bf16.mxu0 0
    %1157 = vmatpush1.bf16.msra.mxu0 0
    %1158 = vmatprep.subr.bf16.mxu0 0
    %1159 = vmatpush1.bf16.msra.mxu0 0
    %1160 = vmatprep.subr.bf16.mxu0 0
    %1161 = vmatpush1.bf16.msra.mxu0 0
    %1162 = vmatprep.subr.bf16.mxu0 0
    %1163 = vmatpush1.bf16.msra.mxu0 %v1142
    %1164 = vmatprep.subr.bf16.mxu0 0
    %1165 = vmatpush1.bf16.msra.mxu0 %v1134
    %1166 = vmatprep.subr.bf16.mxu0 0
    %1167 = vmatpush1.bf16.msra.mxu0 %v1133
    %1168 = vmatprep.subr.bf16.mxu0 0
    %1169 = vmatpush2.bf16.msra.mxu0 0
    %1170 = vmatprep.subr.bf16.mxu0 0
    %1171 = vmatpush2.bf16.msra.mxu0 0
    %1172 = vmatprep.subr.bf16.mxu0 0
    %1173 = vmatpush2.bf16.msra.mxu0 0
    %1174 = vmatprep.subr.bf16.mxu0 0
    %1175 = vmatpush2.bf16.msra.mxu0 0
    %1176 = vmatprep.subr.bf16.mxu0 0
    %1177 = vmatpush2.bf16.msra.mxu0 0
    %1178 = vmatprep.subr.bf16.mxu0 0
    %1179 = vmatpush2.bf16.msra.mxu0 0
    %1180 = vmatprep.subr.bf16.mxu0 0
    %1181 = vmatpush2.bf16.msra.mxu0 0
    %1182 = vmatprep.subr.bf16.mxu0 0
    %1183 = vmatpush2.bf16.msra.mxu0 0
    %1184 = vmatprep.mubr.bf16.mxu0 0
    %1185 = vmatmul.mubr.bf16.gmra.mxu0 %v690
    %v1186 = vpop.f32.mrf.mxu0
    %v1187 = vadd.f32 %v1150, %v1186
    %v1188 = vpop.f32.mrf.mxu0
    %v1189 = vpop.f32.mrf.mxu0
    %v1190 = vadd.f32 %v1150, %v1189
    %v1191 = vpop.f32.mrf.mxu0
    %1192 = vmatprep.mubr.bf16.mxu0 0
    %1193 = vmatmul.mubr.bf16.gmra.mxu0 %v693
    %v1194 = vpop.f32.mrf.mxu0
    %v1195 = vadd.f32 %v1150, %v1194
    %v1196 = vpop.f32.mrf.mxu0
    %v1197 = vpop.f32.mrf.mxu0
    %v1198 = vadd.f32 %v1150, %v1197
    %v1199 = vpop.f32.mrf.mxu0
    %1200 = vmatprep.mubr.bf16.mxu0 0
    %1201 = vmatmul.mubr.bf16.gmra.mxu0 %v696
    %v1202 = vpop.f32.mrf.mxu0
    %v1203 = vadd.f32 %v1150, %v1202
    %v1204 = vpop.f32.mrf.mxu0
    %v1205 = vpop.f32.mrf.mxu0
    %v1206 = vadd.f32 %v1150, %v1205
    %v1207 = vpop.f32.mrf.mxu0
    %1208 = vmatprep.mubr.bf16.mxu0 0
    %1209 = vmatmul.mubr.bf16.gmra.mxu0 %v699
    %v1210 = vpop.f32.mrf.mxu0
    %v1211 = vadd.f32 %v1150, %v1210
    %v1212 = vpop.f32.mrf.mxu0
    %v1213 = vpop.f32.mrf.mxu0
    %v1214 = vadd.f32 %v1150, %v1213
    %v1215 = vpop.f32.mrf.mxu0
    %1216 = vmatprep.mubr.bf16.mxu0 0
    %1217 = vmatmul.mubr.bf16.gmra.mxu0 %v702
    %v1218 = vpop.f32.mrf.mxu0
    %v1219 = vadd.f32 %v1150, %v1218
    %v1220 = vpop.f32.mrf.mxu0
    %v1221 = vpop.f32.mrf.mxu0
    %v1222 = vadd.f32 %v1150, %v1221
    %v1223 = vpop.f32.mrf.mxu0
    %1224 = vmatprep.mubr.bf16.mxu0 0
    %1225 = vmatmul.mubr.bf16.gmra.mxu0 %v705
    %v1226 = vpop.f32.mrf.mxu0
    %v1227 = vadd.f32 %v1150, %v1226
    %v1228 = vpop.f32.mrf.mxu0
    %v1229 = vpop.f32.mrf.mxu0
    %v1230 = vadd.f32 %v1150, %v1229
    %v1231 = vpop.f32.mrf.mxu0
    %1232 = vmatprep.mubr.bf16.mxu0 0
    %1233 = vmatmul.mubr.bf16.gmra.mxu0 %v708
    %v1234 = vpop.f32.mrf.mxu0
    %v1235 = vadd.f32 %v1150, %v1234
    %v1236 = vpop.f32.mrf.mxu0
    %v1237 = vpop.f32.mrf.mxu0
    %v1238 = vadd.f32 %v1150, %v1237
    %v1239 = vpop.f32.mrf.mxu0
    %1240 = vmatprep.mubr.bf16.mxu0 0
    %1241 = vmatmul.mubr.bf16.gmra.mxu0 %v711
    %v1242 = vpop.f32.mrf.mxu0
    %v1243 = vadd.f32 %v1150, %v1242
    %v1244 = vpop.f32.mrf.mxu0
    %v1245 = vpop.f32.mrf.mxu0
    %v1246 = vadd.f32 %v1150, %v1245
    %v1247 = vpop.f32.mrf.mxu0
    %1248 = vmatprep.mubr.bf16.mxu0 0
    %1249 = vmatmul.mubr.bf16.gmra.mxu0 %v714
    %v1250 = vpop.f32.mrf.mxu0
    %v1251 = vadd.f32 %v1150, %v1250
    %v1252 = vpop.f32.mrf.mxu0
    %v1253 = vpop.f32.mrf.mxu0
    %v1254 = vadd.f32 %v1150, %v1253
    %v1255 = vpop.f32.mrf.mxu0
    %1256 = vmatprep.mubr.bf16.mxu0 0
    %1257 = vmatmul.mubr.bf16.gmra.mxu0 %v717
    %v1258 = vpop.f32.mrf.mxu0
    %v1259 = vadd.f32 %v1150, %v1258
    %v1260 = vpop.f32.mrf.mxu0
    %v1261 = vpop.f32.mrf.mxu0
    %v1262 = vadd.f32 %v1150, %v1261
    %v1263 = vpop.f32.mrf.mxu0
    %1264 = vmatprep.mubr.bf16.mxu0 0
    %1265 = vmatmul.mubr.bf16.gmra.mxu0 %v720
    %v1266 = vpop.f32.mrf.mxu0
    %v1267 = vadd.f32 %v1150, %v1266
    %v1268 = vpop.f32.mrf.mxu0
    %v1269 = vpop.f32.mrf.mxu0
    %v1270 = vadd.f32 %v1150, %v1269
    %v1271 = vpop.f32.mrf.mxu0
    %1272 = vmatprep.mubr.bf16.mxu0 0
    %1273 = vmatmul.mubr.bf16.gmra.mxu0 %v723
    %v1274 = vpop.f32.mrf.mxu0
    %v1275 = vadd.f32 %v1150, %v1274
    %v1276 = vpop.f32.mrf.mxu0
    %v1277 = vpop.f32.mrf.mxu0
    %v1278 = vadd.f32 %v1150, %v1277
    %v1279 = vpop.f32.mrf.mxu0
    %1280 = vmatprep.mubr.bf16.mxu0 0
    %1281 = vmatmul.mubr.bf16.gmra.mxu0 %v726
    %v1282 = vpop.f32.mrf.mxu0
    %v1283 = vadd.f32 %v1150, %v1282
    %v1284 = vpop.f32.mrf.mxu0
    %v1285 = vpop.f32.mrf.mxu0
    %v1286 = vadd.f32 %v1150, %v1285
    %v1287 = vpop.f32.mrf.mxu0
    %1288 = vmatprep.mubr.bf16.mxu0 0
    %1289 = vmatmul.mubr.bf16.gmra.mxu0 %v729
    %v1290 = vpop.f32.mrf.mxu0
    %v1291 = vadd.f32 %v1150, %v1290
    %v1292 = vpop.f32.mrf.mxu0
    %v1293 = vpop.f32.mrf.mxu0
    %v1294 = vadd.f32 %v1150, %v1293
    %v1295 = vpop.f32.mrf.mxu0
    %1296 = vdwg.mxu0
    %v1297 = vmax.f32 %v1187, 0.0
    %v1298 = vmax.f32 %v1190, 0.0
    %v1299 = vmax.f32 %v1195, 0.0
    %v1300 = vmax.f32 %v1198, 0.0
    %v1301 = vmax.f32 %v1203, 0.0
    %v1302 = vmax.f32 %v1206, 0.0
    %v1303 = vmax.f32 %v1211, 0.0
    %v1304 = vmax.f32 %v1214, 0.0
    %v1305 = vmax.f32 %v1219, 0.0
    %v1306 = vmax.f32 %v1222, 0.0
    %v1307 = vmax.f32 %v1227, 0.0
    %v1308 = vmax.f32 %v1230, 0.0
    %v1309 = vmax.f32 %v1235, 0.0
    %v1310 = vmax.f32 %v1238, 0.0
    %v1311 = vmax.f32 %v1243, 0.0
    %v1312 = vmax.f32 %v1246, 0.0
    %v1313 = vmax.f32 %v1251, 0.0
    %v1314 = vmax.f32 %v1254, 0.0
    %v1315 = vmax.f32 %v1259, 0.0
    %v1316 = vmax.f32 %v1262, 0.0
    %v1317 = vmax.f32 %v1267, 0.0
    %v1318 = vmax.f32 %v1270, 0.0
    %v1319 = vmax.f32 %v1275, 0.0
    %v1320 = vmax.f32 %v1278, 0.0
    %v1321 = vmax.f32 %v1283, 0.0
    %v1322 = vmax.f32 %v1286, 0.0
    %v1323 = vmax.f32 %v1291, 0.0
    %v1324 = vmax.f32 %v1294, 0.0
    %v1325 = vmax.f32 %v1297, %v1301
    %v1326 = vmax.f32 %v1298, %v1302
    %v1327 = vmax.f32 %v1299, %v1303
    %v1328 = vmax.f32 %v1300, %v1304
    %v1329 = vmax.f32 %v1305, %v1309
    %v1330 = vmax.f32 %v1306, %v1310
    %v1331 = vmax.f32 %v1307, %v1311
    %v1332 = vmax.f32 %v1308, %v1312
    %v1333 = vmax.f32 %v1313, %v1317
    %v1334 = vmax.f32 %v1314, %v1318
    %v1335 = vmax.f32 %v1315, %v1319
    %v1336 = vmax.f32 %v1316, %v1320
    %v1337 = vmax.f32 %v1325, %v1329
    %v1338 = vmax.f32 %v1326, %v1330
    %v1339 = vmax.f32 %v1327, %v1331
    %v1340 = vmax.f32 %v1328, %v1332
    %v1341 = vmax.f32 %v1333, %v1321
    %v1342 = vmax.f32 %v1334, %v1322
    %v1343 = vmax.f32 %v1335, %v1323
    %v1344 = vmax.f32 %v1336, %v1324
    %v1345 = vmax.f32 %v1337, %v1341
    %v1346 = vmax.f32 %v1338, %v1342
    %v1347 = vmax.f32 %v1339, %v1343
    %v1348 = vmax.f32 %v1340, %v1344
    %v1349 = vpack.c.bf16 %v1346, %v1345
    %v1350 = vpack.c.bf16 %v1348, %v1347
    %s1351 = scalar_lea.vmem %s6, 8
    %v1352 = vld [vmem:[%s1351] sm:$0xf]
    %v1353 = vld [vmem:[%s1351 + $0x4] sm:$0xf]
    %s1354 = scalar_lea.vmem %s7, 1
    %v1355 = vld [vmem:[%s1354] sm:$0x1]
    %v1357 = vlaneseq
    %v1358 = vshrl.u32 %v1357, 7
    %v1359 = vsub.s32 0, %v1358
    %v1360 = vrot.slane %v1355, %v1359
    %v1364 = vunpack.c.l.b16 %v1352
    %v1365 = vunpack.c.l.b16 %v1353
    %v1366 = vpack.c.b16 %v1365, %v1364
    %v1369 = vsel %vm615, %v1349, 0
    %v1372 = vsel %vm615, %v1350, 0
    %1374 = vmatprep.subr.bf16.mxu0 0
    %1375 = vmatpush1.bf16.msra.mxu0 0
    %1376 = vmatprep.subr.bf16.mxu0 0
    %1377 = vmatpush1.bf16.msra.mxu0 0
    %1378 = vmatprep.subr.bf16.mxu0 0
    %1379 = vmatpush1.bf16.msra.mxu0 0
    %1380 = vmatprep.subr.bf16.mxu0 0
    %1381 = vmatpush1.bf16.msra.mxu0 0
    %1382 = vmatprep.subr.bf16.mxu0 0
    %1383 = vmatpush1.bf16.msra.mxu0 0
    %1384 = vmatprep.subr.bf16.mxu0 0
    %1385 = vmatpush1.bf16.msra.mxu0 0
    %1386 = vmatprep.subr.bf16.mxu0 0
    %1387 = vmatpush1.bf16.msra.mxu0 0
    %1388 = vmatprep.subr.bf16.mxu0 0
    %1389 = vmatpush1.bf16.msra.mxu0 %v1366
    %1390 = vmatprep.subr.bf16.mxu0 0
    %1391 = vmatpush2.bf16.msra.mxu0 0
    %1392 = vmatprep.subr.bf16.mxu0 0
    %1393 = vmatpush2.bf16.msra.mxu0 0
    %1394 = vmatprep.subr.bf16.mxu0 0
    %1395 = vmatpush2.bf16.msra.mxu0 0
    %1396 = vmatprep.subr.bf16.mxu0 0
    %1397 = vmatpush2.bf16.msra.mxu0 0
    %1398 = vmatprep.subr.bf16.mxu0 0
    %1399 = vmatpush2.bf16.msra.mxu0 0
    %1400 = vmatprep.subr.bf16.mxu0 0
    %1401 = vmatpush2.bf16.msra.mxu0 0
    %1402 = vmatprep.subr.bf16.mxu0 0
    %1403 = vmatpush2.bf16.msra.mxu0 0
    %1404 = vmatprep.subr.bf16.mxu0 0
    %1405 = vmatpush2.bf16.msra.mxu0 0
    %1406 = vmatprep.mubr.bf16.mxu0 0
    %1407 = vmatmul.mubr.bf16.gmra.mxu0 %v1369
    %v1408 = vpop.f32.mrf.mxu0
    %v1409 = vadd.f32 %v1360, %v1408
    %v1410 = vpop.f32.mrf.mxu0
    %v1411 = vpop.f32.mrf.mxu0
    %v1412 = vadd.f32 %v1360, %v1411
    %v1413 = vpop.f32.mrf.mxu0
    %1414 = vmatprep.mubr.bf16.mxu0 0
    %1415 = vmatmul.mubr.bf16.gmra.mxu0 %v1372
    %v1416 = vpop.f32.mrf.mxu0
    %v1417 = vadd.f32 %v1360, %v1416
    %v1418 = vpop.f32.mrf.mxu0
    %v1419 = vpop.f32.mrf.mxu0
    %v1420 = vadd.f32 %v1360, %v1419
    %v1421 = vpop.f32.mrf.mxu0
    %1422 = vdwg.mxu0
    %v1423 = vmax.f32 %v1409, 0.0
    %v1424 = vmax.f32 %v1412, 0.0
    %v1425 = vmax.f32 %v1417, 0.0
    %v1426 = vmax.f32 %v1420, 0.0
    %v1427 = vadd.f32 %v1423, %v1424
    %v1428 = vadd.f32 %v1427, %v1425
    %v1429 = vadd.f32 %v1428, %v1426
    %v1430 = vrot.slane %v1429, 4
    %v1431 = vadd.f32 %v1429, %v1430
    %v1432 = vrot.slane %v1431, 2
    %v1433 = vadd.f32 %v1431, %v1432
    %v1434 = vrot.slane %v1433, 1
    %v1435 = vadd.f32 %v1433, %v1434
    %v1436 = vmul.f32 %v1435, %v1013
    %v1437 = vmul.f32 %v1423, %v1423
    %v1438 = vmul.f32 %v1424, %v1424
    %v1439 = vmul.f32 %v1425, %v1425
    %v1440 = vmul.f32 %v1426, %v1426
    %v1441 = vadd.f32 %v1437, %v1438
    %v1442 = vadd.f32 %v1441, %v1439
    %v1443 = vadd.f32 %v1442, %v1440
    %v1444 = vrot.slane %v1443, 4
    %v1445 = vadd.f32 %v1443, %v1444
    %v1446 = vrot.slane %v1445, 2
    %v1447 = vadd.f32 %v1445, %v1446
    %v1448 = vrot.slane %v1447, 1
    %v1449 = vadd.f32 %v1447, %v1448
    %v1450 = vmul.f32 %v1449, %v1013
    %v1451 = vmul.f32 %v1436, %v1436
    %v1452 = vsub.f32 %v1450, %v1451
    %v1453 = vsub.f32 %v1423, %v1436
    %v1454 = vsub.f32 %v1424, %v1436
    %v1455 = vsub.f32 %v1425, %v1436
    %v1456 = vsub.f32 %v1426, %v1436
    %v1457 = vadd.f32 %v1452, 1e-05
    %v1458 = vrsqrt.pop %v1457
    %v1459 = vmul.f32 %v1453, %v1458
    %v1460 = vmul.f32 %v1454, %v1458
    %v1461 = vmul.f32 %v1455, %v1458
    %v1462 = vmul.f32 %v1456, %v1458
    %s1463 = scalar_lea.vmem %s8, 1
    %v1464 = vld [vmem:[%s1463] sm:$0x1]
    %v1466 = vlaneseq
    %v1467 = vshrl.u32 %v1466, 7
    %v1468 = vsub.s32 0, %v1467
    %v1469 = vrot.slane %v1464, %v1468
    %v1471 = vmul.f32 %v1459, %v1469
    %v1472 = vmul.f32 %v1460, %v1469
    %v1473 = vmul.f32 %v1461, %v1469
    %v1474 = vmul.f32 %v1462, %v1469
    %s1475 = scalar_lea.vmem %s9, 1
    %v1476 = vld [vmem:[%s1475] sm:$0x1]
    %v1478 = vlaneseq
    %v1479 = vshrl.u32 %v1478, 7
    %v1480 = vsub.s32 0, %v1479
    %v1481 = vrot.slane %v1476, %v1480
    %v1483 = vadd.f32 %v1471, %v1481
    %v1484 = vadd.f32 %v1472, %v1481
    %v1485 = vadd.f32 %v1473, %v1481
    %v1486 = vadd.f32 %v1474, %v1481
    %v1487 = vmax.f32 %v1483, 0.0
    %v1488 = vmax.f32 %v1484, 0.0
    %v1489 = vmax.f32 %v1485, 0.0
    %v1490 = vmax.f32 %v1486, 0.0
    %v1491 = vmax.f32 %v1487, %v1488
    %v1492 = vrot.slane %v1491, 4
    %v1493 = vmax.f32 %v1491, %v1492
    %v1494 = vrot.slane %v1493, 2
    %v1495 = vmax.f32 %v1493, %v1494
    %v1496 = vrot.slane %v1495, 1
    %v1497 = vmax.f32 %v1495, %v1496
    %v1498 = vmax.f32 %v1489, %v1490
    %v1499 = vrot.slane %v1498, 4
    %v1500 = vmax.f32 %v1498, %v1499
    %v1501 = vrot.slane %v1500, 2
    %v1502 = vmax.f32 %v1500, %v1501
    %v1503 = vrot.slane %v1502, 1
    %v1504 = vmax.f32 %v1502, %v1503
    %vm1505 = vcmask 1040384
    %v1506 = vsel %vm1505, %v1497, %v1504
    %v1507 = vpack.c.bf16 %v1506, %v1506
    %v1508 = vld [vmem:[%s10] sm:$0xf]
    %v1509 = vld [vmem:[%s10 + $0x4] sm:$0xf]
    %v1510 = vld [vmem:[%s11] sm:$0x1]
    %v1512 = vlaneseq
    %v1513 = vshrl.u32 %v1512, 7
    %v1514 = vsub.s32 0, %v1513
    %v1515 = vrot.slane %v1510, %v1514
    %v1519 = vunpack.c.l.b16 %v1508
    %v1520 = vunpack.c.l.b16 %v1509
    %v1521 = vpack.c.b16 %v1520, %v1519
    %v1524 = vsel %vm615, %v1507, 0
    %1526 = vmatprep.subr.bf16.mxu0 0
    %1527 = vmatpush1.bf16.msra.mxu0 0
    %1528 = vmatprep.subr.bf16.mxu0 0
    %1529 = vmatpush1.bf16.msra.mxu0 0
    %1530 = vmatprep.subr.bf16.mxu0 0
    %1531 = vmatpush1.bf16.msra.mxu0 0
    %1532 = vmatprep.subr.bf16.mxu0 0
    %1533 = vmatpush1.bf16.msra.mxu0 0
    %1534 = vmatprep.subr.bf16.mxu0 0
    %1535 = vmatpush1.bf16.msra.mxu0 0
    %1536 = vmatprep.subr.bf16.mxu0 0
    %1537 = vmatpush1.bf16.msra.mxu0 0
    %1538 = vmatprep.subr.bf16.mxu0 0
    %1539 = vmatpush1.bf16.msra.mxu0 0
    %1540 = vmatprep.subr.bf16.mxu0 0
    %1541 = vmatpush1.bf16.msra.mxu0 %v1521
    %1542 = vmatprep.subr.bf16.mxu0 0
    %1543 = vmatpush2.bf16.msra.mxu0 0
    %1544 = vmatprep.subr.bf16.mxu0 0
    %1545 = vmatpush2.bf16.msra.mxu0 0
    %1546 = vmatprep.subr.bf16.mxu0 0
    %1547 = vmatpush2.bf16.msra.mxu0 0
    %1548 = vmatprep.subr.bf16.mxu0 0
    %1549 = vmatpush2.bf16.msra.mxu0 0
    %1550 = vmatprep.subr.bf16.mxu0 0
    %1551 = vmatpush2.bf16.msra.mxu0 0
    %1552 = vmatprep.subr.bf16.mxu0 0
    %1553 = vmatpush2.bf16.msra.mxu0 0
    %1554 = vmatprep.subr.bf16.mxu0 0
    %1555 = vmatpush2.bf16.msra.mxu0 0
    %1556 = vmatprep.subr.bf16.mxu0 0
    %1557 = vmatpush2.bf16.msra.mxu0 0
    %1558 = vmatprep.mubr.bf16.mxu0 0
    %1559 = vmatmul.mubr.bf16.gmra.mxu0 %v1524
    %v1560 = vpop.f32.mrf.mxu0
    %v1561 = vadd.f32 %v1515, %v1560
    %v1562 = vpop.f32.mrf.mxu0
    %v1563 = vpop.f32.mrf.mxu0
    %v1564 = vpop.f32.mrf.mxu0
    %1565 = vdwg.mxu0
    %1566 = vst [vmem:[#allocation2] sm:$0x3] %v1561
    // Predicated region
    $region50: #{tpu_custom_call.1} parent=1 // pred_check
      _
    $region51: #{tpu_custom_call.1} parent=1 // pred_check_branch
      %1568 = sbr.rel (0) target = $region53
    $region52: #{tpu_custom_call.1} parent=1 // pred_region
      %s1570 = ssub.s32 32, 32
      %1571 = vsyncadd [#allocation3], %s1570
      %s1573 = sshll.u32 [#allocation2], 4
      %s1574 = int_to_ptr.vmem [resolvable:$true] %s1573
      %1576 = dma.vmem_to_hbm [thread:$0]  %s1574, 32, %s12, [#allocation3]
    $region53: #{tpu_custom_call.1} parent=1 // pred_fallthru
      _
    // Predicated region
    $region54: #{tpu_custom_call.1} parent=1 // pred_check
      _
    $region55: #{tpu_custom_call.1} parent=1 // pred_check_branch
      %1578 = sbr.rel (0) target = $region57
    $region56: #{tpu_custom_call.1} parent=1 // pred_region
      %1579 = dma.done [#allocation3], 32
    $region57: #{tpu_custom_call.1} parent=1 // pred_fallthru
      _
    %1580 = vsyncpa [#allocation3], 1

</llo_original>
